<compile_context>
chip_gen: v7x
topology: tpu7x:2x2x1
jax: 0.10.0
libtpu: 0.0.40
codegen_flags: <defaults>
</compile_context>

<pallas_src>
import numpy as np
import jax
import jax.numpy as jnp
from jax.experimental import pallas as pl
from jax.experimental.pallas import tpu as pltpu


def _round_up(x, m):
    return ((x + m - 1) // m) * m


def _choose_p_tile(p):
    """Largest 128-aligned tile (<=2048) that divides P; else single full tile."""
    if p % 128 != 0:
        return p
    for cand in (2048, 1024, 512, 256, 128):
        if p % cand == 0:
            return cand
    return p


# -----------------------------------------------------------------------------
# Pallas kernel: batched cost matrix, only the last num_new_ins query rows.
#   C = w_mask * batch_sigmoid_ce + w_class * (-prob[:, tgt_ids]) + w_dice * dice
#   C[:, ~new_inst] = 1e6   (column masking done in-kernel via new_mask)
# -----------------------------------------------------------------------------
def _make_cost_kernel(num_points, r_pad, w_class, w_mask, w_dice):
    big = 1.0e6
    inv_p = 1.0 / float(num_points)

    def cost_kernel(outp_ref, tgtp_ref, cls_ref, new_ref, c_ref,
                    acc_mt, acc_sp, acc_sg, acc_t):
        k = pl.program_id(1)

        @pl.when(k == 0)
        def _():
            acc_mt[...] = jnp.zeros_like(acc_mt)
            acc_sp[...] = jnp.zeros_like(acc_sp)
            acc_sg[...] = jnp.zeros_like(acc_sg)
            acc_t[...] = jnp.zeros_like(acc_t)

        x = outp_ref[...]            # (R_PAD, P_TILE) predicted mask logits
        t = tgtp_ref[...]            # (T_PAD, P_TILE) target masks at points

        sig = jax.nn.sigmoid(x)
        # softplus(x) == BCE(x, target=0), numerically stable form.
        sp = jnp.maximum(x, 0.0) + jnp.log1p(jnp.exp(-jnp.abs(x)))

        # Single stacked bf16 MXU pass (f32 accumulate):
        #   [ -x ; sigmoid(x) ] @ t.T  ->  [ dot(-x, t.T) ; dot(sig, t.T) ]
        a = jnp.concatenate([-x, sig], axis=0).astype(jnp.bfloat16)
        acc_mt[...] += jax.lax.dot_general(
            a, t.astype(jnp.bfloat16),
            dimension_numbers=(((1,), (1,)), ((), ())),
            preferred_element_type=jnp.float32)

        acc_sp[...] += jnp.sum(sp, axis=-1, keepdims=True)    # (R_PAD, 1)
        acc_sg[...] += jnp.sum(sig, axis=-1, keepdims=True)   # (R_PAD, 1)
        acc_t[...] += jnp.sum(t, axis=-1)[None, :]            # (1, T_PAD)

        @pl.when(k == pl.num_programs(1) - 1)
        def _():
            mask_dot = acc_mt[:r_pad, :]
            dice_num = acc_mt[r_pad:, :]
            # BCE: dot(pos,t.T)+dot(neg,(1-t).T) == dot(-x,t.T)+rowsum(softplus(x))
            cost_mask = (mask_dot + acc_sp[...]) * inv_p
            denom = acc_sg[...] + acc_t[...] + 1.0
            cost_dice = 1.0 - (2.0 * dice_num + 1.0) * pl.reciprocal(denom,
                                                                     approx=True)
            C = w_mask * cost_mask + w_class * cls_ref[...] + w_dice * cost_dice
            # C[:, ~new_inst] = 1e6  (padded columns also have new_mask == 0)
            c_ref[...] = jnp.where(new_ref[...] > 0.5, C, big)

    return cost_kernel


def compute_cost_matrices_pallas(out_pts, tgt_pts, cost_class, new_mask, *,
                                 w_class, w_mask, w_dice):
    """out_pts: (B, R_PAD, P) f32, tgt_pts: (B, T_PAD, P) f32,
    cost_class: (B, R_PAD, T_PAD) f32, new_mask: (B, 1, T_PAD) f32.
    Returns (B, R_PAD, T_PAD) f32 cost matrices (rows = last num_new_ins queries)."""
    B, R_PAD, P = out_pts.shape
    T_PAD = tgt_pts.shape[1]
    P_TILE = _choose_p_tile(P)
    KP = P // P_TILE

    kernel = _make_cost_kernel(P, R_PAD, w_class, w_mask, w_dice)
    return pl.pallas_call(
        kernel,
        out_shape=jax.ShapeDtypeStruct((B, R_PAD, T_PAD), jnp.float32),
        grid_spec=pltpu.PrefetchScalarGridSpec(
            num_scalar_prefetch=0,
            grid=(B, KP),
            in_specs=[
                pl.BlockSpec((None, R_PAD, P_TILE), lambda b, k: (b, 0, k)),
                pl.BlockSpec((None, T_PAD, P_TILE), lambda b, k: (b, 0, k)),
                pl.BlockSpec((None, R_PAD, T_PAD), lambda b, k: (b, 0, 0)),
                pl.BlockSpec((None, 1, T_PAD), lambda b, k: (b, 0, 0)),
            ],
            out_specs=pl.BlockSpec((None, R_PAD, T_PAD), lambda b, k: (b, 0, 0)),
            scratch_shapes=[
                pltpu.VMEM((2 * R_PAD, T_PAD), jnp.float32),   # stacked matmul acc
                pltpu.VMEM((R_PAD, 1), jnp.float32),           # rowsum softplus(x)
                pltpu.VMEM((R_PAD, 1), jnp.float32),           # rowsum sigmoid(x)
                pltpu.VMEM((1, T_PAD), jnp.float32),           # rowsum t
            ]),
        compiler_params=pltpu.CompilerParams(
            dimension_semantics=("parallel", "arbitrary"),
            vmem_limit_bytes=32 * 1024 * 1024),
    )(out_pts, tgt_pts, cost_class, new_mask)


# -----------------------------------------------------------------------------
# Glue: point_sample (bilinear grid_sample, align_corners=False, zero padding)
# -----------------------------------------------------------------------------
def point_sample_bilinear(masks, coords):
    """masks: (N, H, W) float, coords: (P, 2) in [0,1] as (x, y). -> (N, P)"""
    N, H, W = masks.shape
    x = coords[:, 0] * W - 0.5
    y = coords[:, 1] * H - 0.5
    x0 = jnp.floor(x)
    y0 = jnp.floor(y)
    x1 = x0 + 1.0
    y1 = y0 + 1.0
    wx1 = x - x0
    wx0 = 1.0 - wx1
    wy1 = y - y0
    wy0 = 1.0 - wy1

    def gather(xi, yi):
        valid = (xi >= 0) & (xi <= W - 1) & (yi >= 0) & (yi <= H - 1)
        xc = jnp.clip(xi, 0, W - 1).astype(jnp.int32)
        yc = jnp.clip(yi, 0, H - 1).astype(jnp.int32)
        vals = masks[:, yc, xc]                       # (N, P)
        return jnp.where(valid[None, :], vals, 0.0)

    out = (gather(x0, y0) * (wx0 * wy0)[None, :]
           + gather(x1, y0) * (wx1 * wy0)[None, :]
           + gather(x0, y1) * (wx0 * wy1)[None, :]
           + gather(x1, y1) * (wx1 * wy1)[None, :])
    return out


# -----------------------------------------------------------------------------
# Host-side Hungarian algorithm (Jonker-Volgenant / e-maxx variant).
# TODO(synk): linear_sum_assignment is an inherently sequential host algorithm;
#             no clean Pallas equivalent, kept in numpy.
# -----------------------------------------------------------------------------
def linear_sum_assignment_np(cost):
    cost = np.asarray(cost, dtype=np.float64)
    transposed = False
    if cost.shape[0] > cost.shape[1]:
        cost = cost.T
        transposed = True
    n, m = cost.shape  # n <= m
    INF = float("inf")
    u = np.zeros(n + 1)
    v = np.zeros(m + 1)
    p = np.zeros(m + 1, dtype=np.int64)
    way = np.zeros(m + 1, dtype=np.int64)
    for i in range(1, n + 1):
        p[0] = i
        j0 = 0
        minv = np.full(m + 1, INF)
        used = np.zeros(m + 1, dtype=bool)
        while True:
            used[j0] = True
            i0 = p[j0]
            delta = INF
            j1 = 0
            for j in range(1, m + 1):
                if not used[j]:
                    cur = cost[i0 - 1, j - 1] - u[i0] - v[j]
                    if cur < minv[j]:
                        minv[j] = cur
                        way[j] = j0
                    if minv[j] < delta:
                        delta = minv[j]
                        j1 = j
            for j in range(m + 1):
                if used[j]:
                    u[p[j]] += delta
                    v[j] -= delta
                else:
                    minv[j] -= delta
            j0 = j1
            if p[j0] == 0:
                break
        while True:
            j1 = way[j0]
            p[j0] = p[j1]
            j0 = j1
            if j0 == 0:
                break
    rows, cols = [], []
    for j in range(1, m + 1):
        if p[j] != 0:
            rows.append(p[j] - 1)
            cols.append(j - 1)
    rows = np.asarray(rows, dtype=np.int64)
    cols = np.asarray(cols, dtype=np.int64)
    if transposed:
        rows, cols = cols, rows
    order = np.argsort(rows)
    return rows[order], cols[order]


# -----------------------------------------------------------------------------
# Matcher (mirrors NewInsHungarianMatcher.memory_efficient_forward)
# -----------------------------------------------------------------------------
class NewInsHungarianMatcherPallas:
    def __init__(self, cost_class=1.0, cost_mask=1.0, cost_dice=1.0,
                 num_points=128, num_new_ins=8, point_seed=0):
        assert cost_class != 0 or cost_mask != 0 or cost_dice != 0
        self.cost_class = float(cost_class)
        self.cost_mask = float(cost_mask)
        self.cost_dice = float(cost_dice)
        self.num_points = int(num_points)
        self.num_new_ins = int(num_new_ins)
        self.point_key = jax.random.PRNGKey(point_seed)

    def forward(self, outputs, targets, prev_frame_indices=None):
        out_prob = jax.nn.softmax(outputs["pred_logits"], axis=-1)   # (B,Q,K)
        pred_masks = outputs["pred_masks"]                           # (B,Q,H,W)
        B, Q, H, W = pred_masks.shape
        R = self.num_new_ins
        R_PAD = _round_up(max(R, 1), 8)
        P = self.num_points

        old_src_i = np.asarray(prev_frame_indices[0], dtype=np.int64)
        old_tgt_i = np.asarray(prev_frame_indices[1], dtype=np.int64)

        # ---- host-side bookkeeping for all batches ----
        new_insts, skip, t_list = [], [], []
        for b in range(B):
            valid_inst = np.asarray(targets[b]["valid_inst"], dtype=bool)
            new_inst = np.zeros_like(valid_inst, dtype=bool)
            new_inst[valid_inst] = True
            new_inst[old_tgt_i] = False
            new_insts.append(new_inst)
            skip.append(bool(np.all(~new_inst)))
            t_list.append(int(new_inst.shape[0]))

        if all(skip):
            return [(jnp.asarray(old_src_i, dtype=jnp.int32),
                     jnp.asarray(old_tgt_i, dtype=jnp.int32)) for _ in range(B)]

        # fixed padded target width -> lane-dense stores + stable compiled shape
        T_PAD = max(128, _round_up(max(t_list + [1]), 128))

        # ---- stage all B batches for a single Pallas launch ----
        pred_tail = pred_masks[:, Q - R:, :, :].astype(jnp.float32)   # (B,R,H,W)
        prob_tail = out_prob[:, Q - R:, :]                            # (B,R,K)

        out_pts_l, tgt_pts_l, cls_l, newm_l = [], [], [], []
        for b in range(B):
            point_coords = jax.random.uniform(
                jax.random.fold_in(self.point_key, b),
                (P, 2), dtype=jnp.float32)
            op = point_sample_bilinear(pred_tail[b], point_coords)    # (R,P)
            op = jnp.pad(op, ((0, R_PAD - R), (0, 0)))
            T = t_list[b]
            if (not skip[b]) and T > 0:
                tgt_mask = jnp.asarray(targets[b]["masks"], dtype=jnp.float32)
                tp = point_sample_bilinear(tgt_mask, point_coords)    # (T,P)
                tp = jnp.pad(tp, ((0, T_PAD - T), (0, 0)))
                tgt_ids = jnp.asarray(targets[b]["labels"], dtype=jnp.int32)
                cc = (-prob_tail[b][:, tgt_ids]).astype(jnp.float32)  # (R,T)
                cc = jnp.pad(cc, ((0, R_PAD - R), (0, T_PAD - T)))
                nm = jnp.pad(jnp.asarray(new_insts[b],
                                         dtype=jnp.float32)[None, :],
                             ((0, 0), (0, T_PAD - T)))
            else:
                tp = jnp.zeros((T_PAD, P), jnp.float32)
                cc = jnp.zeros((R_PAD, T_PAD), jnp.float32)
                nm = jnp.zeros((1, T_PAD), jnp.float32)
            out_pts_l.append(op)
            tgt_pts_l.append(tp)
            cls_l.append(cc)
            newm_l.append(nm)

        out_pts = jnp.stack(out_pts_l)        # (B, R_PAD, P)
        tgt_pts = jnp.stack(tgt_pts_l)        # (B, T_PAD, P)
        cost_class = jnp.stack(cls_l)         # (B, R_PAD, T_PAD)
        new_mask = jnp.stack(newm_l)          # (B, 1, T_PAD)

        # ---- one launch, one device->host transfer ----
        C_all = compute_cost_matrices_pallas(
            out_pts, tgt_pts, cost_class, new_mask,
            w_class=self.cost_class, w_mask=self.cost_mask,
            w_dice=self.cost_dice)
        C_np = np.asarray(jax.block_until_ready(C_all))   # (B, R_PAD, T_PAD)

        # ---- host loop: Hungarian assignment per batch ----
        indices = []
        for b in range(B):
            if skip[b]:
                indices.append((old_src_i, old_tgt_i))
                continue
            T = t_list[b]
            new_inst = new_insts[b]
            # Reconstruct the full masked (Q, T) matrix: rows outside the last
            # num_new_ins queries are exactly 1e6 in the reference (never used),
            # so they are filled host-side instead of being computed on device.
            C_full = np.full((Q, T), 1.0e6, dtype=np.float64)
            C_full[Q - R:, :] = C_np[b, :R, :T]

            src_i, tgt_i = linear_sum_assignment_np(C_full)
            sorted_idx = np.argsort(tgt_i)
            src_i, tgt_i = src_i[sorted_idx], tgt_i[sorted_idx]

            if len(src_i) == len(new_inst):
                new_tgt_i = tgt_i[new_inst]
                new_src_i = src_i[new_inst]
            else:
                tgt_i_is_new = new_inst[tgt_i]
                new_tgt_i = tgt_i[tgt_i_is_new]
                new_src_i = src_i[tgt_i_is_new]

            assert np.all(new_src_i >= Q - self.num_new_ins)
            all_src_i = np.concatenate((old_src_i, new_src_i), axis=0)
            all_tgt_i = np.concatenate((old_tgt_i, new_tgt_i), axis=0)
            indices.append((all_src_i, all_tgt_i))

        # (torch.int64 in reference; int32 here since jax x64 is off by default)
        return [(jnp.asarray(i, dtype=jnp.int32), jnp.asarray(j, dtype=jnp.int32))
                for i, j in indices]


# -----------------------------------------------------------------------------
# Demo
# -----------------------------------------------------------------------------
if __name__ == "__main__":
    key = jax.random.PRNGKey(0)
    B, Q, H, W = 2, 16, 16, 16
    num_classes = 10          # pred_logits has num_classes + 1 channels
    T = 6                     # targets per batch element
    num_points = 128
    num_new_ins = 8

    k1, k2, k3, k4 = jax.random.split(key, 4)
    pred_logits = jax.random.normal(k1, (B, Q, num_classes + 1), dtype=jnp.float32)
    pred_masks = jax.random.normal(k2, (B, Q, H, W), dtype=jnp.float32)

    outputs = {"pred_logits": pred_logits, "pred_masks": pred_masks}

    targets = []
    for b in range(B):
        kb1, kb2 = jax.random.split(jax.random.fold_in(k3, b))
        labels = jax.random.randint(kb1, (T,), 0, num_classes + 1, dtype=jnp.int32)
        masks = (jax.random.uniform(kb2, (T, H, W)) > 0.5).astype(jnp.float32)
        valid_inst = np.array([True, True, True, True, True, False])
        targets.append({"labels": labels, "masks": masks, "valid_inst": valid_inst})

    # previously-matched instances: queries 8,9 <-> targets 0,1
    prev_frame_indices = (np.array([8, 9], dtype=np.int64),
                          np.array([0, 1], dtype=np.int64))

    matcher = NewInsHungarianMatcherPallas(
        cost_class=2.0, cost_mask=5.0, cost_dice=5.0,
        num_points=num_points, num_new_ins=num_new_ins, point_seed=0)

    result = matcher.forward(outputs, targets, prev_frame_indices)
    for src, tgt in result:
        jax.block_until_ready(src)
        jax.block_until_ready(tgt)

    print("KERNEL_OK")
</pallas_src>

<mosaic_0001>
module attributes {stable_mosaic.version = 11 : i64} {
  func.func @cost_kernel(%arg0: i32, %arg1: i32, %arg2: memref<1x8x128xf32, #tpu.memory_space<vmem>>, %arg3: memref<1x128x128xf32, #tpu.memory_space<vmem>>, %arg4: memref<1x8x128xf32, #tpu.memory_space<vmem>>, %arg5: memref<1x1x128xf32, #tpu.memory_space<vmem>>, %arg6: memref<1x8x128xf32, #tpu.memory_space<vmem>>, %arg7: memref<16x128xf32, #tpu.memory_space<vmem>>, %arg8: memref<8x1xf32, #tpu.memory_space<vmem>>, %arg9: memref<8x1xf32, #tpu.memory_space<vmem>>, %arg10: memref<1x128xf32, #tpu.memory_space<vmem>>) attributes {dimension_semantics = [#tpu.dimension_semantics<parallel>, #tpu.dimension_semantics<arbitrary>], iteration_bounds = array<i64: 2, 1>, scalar_prefetch = 0 : i64, scratch_operands = 4 : i64, tpu.core_type = #tpu.core_type<tc>, window_params = [{transform_indices = @transform_0, window_bounds = array<i64: 1, 8, 128>}, {transform_indices = @transform_1, window_bounds = array<i64: 1, 128, 128>}, {transform_indices = @transform_2, window_bounds = array<i64: 1, 8, 128>}, {transform_indices = @transform_3, window_bounds = array<i64: 1, 1, 128>}, {transform_indices = @transform_4, window_bounds = array<i64: 1, 8, 128>}]} {
    %c0_i32 = arith.constant 0 : i32
    %0 = arith.cmpi eq, %arg1, %c0_i32 : i32
    %1 = arith.extui %0 : i1 to i32
    %c0_i32_0 = arith.constant 0 : i32
    %2 = arith.cmpi ne, %1, %c0_i32_0 : i32
    scf.if %2 {
      %cst_31 = arith.constant 0.000000e+00 : f32
      %47 = vector.broadcast %cst_31 : f32 to vector<16x128xf32>
      %c0_32 = arith.constant 0 : index
      %c0_33 = arith.constant 0 : index
      %48 = vector.load %arg7[%c0_32, %c0_33] : memref<16x128xf32, #tpu.memory_space<vmem>>, vector<16x128xf32>
      tpu.vector_store %arg7[%c0_32, %c0_33], %47 {strides = array<i32>} : memref<16x128xf32, #tpu.memory_space<vmem>>, vector<16x128xf32>,
      %cst_34 = arith.constant 0.000000e+00 : f32
      %49 = vector.broadcast %cst_34 : f32 to vector<8x1xf32>
      %c0_35 = arith.constant 0 : index
      %c0_36 = arith.constant 0 : index
      %50 = vector.load %arg8[%c0_35, %c0_36] : memref<8x1xf32, #tpu.memory_space<vmem>>, vector<8x1xf32>
      tpu.vector_store %arg8[%c0_35, %c0_36], %49 {strides = array<i32>} : memref<8x1xf32, #tpu.memory_space<vmem>>, vector<8x1xf32>,
      %cst_37 = arith.constant 0.000000e+00 : f32
      %51 = vector.broadcast %cst_37 : f32 to vector<8x1xf32>
      %c0_38 = arith.constant 0 : index
      %c0_39 = arith.constant 0 : index
      %52 = vector.load %arg9[%c0_38, %c0_39] : memref<8x1xf32, #tpu.memory_space<vmem>>, vector<8x1xf32>
      tpu.vector_store %arg9[%c0_38, %c0_39], %51 {strides = array<i32>} : memref<8x1xf32, #tpu.memory_space<vmem>>, vector<8x1xf32>,
      %cst_40 = arith.constant 0.000000e+00 : f32
      %53 = vector.broadcast %cst_40 : f32 to vector<1x128xf32>
      %c0_41 = arith.constant 0 : index
      %c0_42 = arith.constant 0 : index
      %54 = vector.load %arg10[%c0_41, %c0_42] : memref<1x128xf32, #tpu.memory_space<vmem>>, vector<1x128xf32>
      tpu.vector_store %arg10[%c0_41, %c0_42], %53 {strides = array<i32>} : memref<1x128xf32, #tpu.memory_space<vmem>>, vector<1x128xf32>,
    } else {
    }
    %c0 = arith.constant 0 : index
    %c0_1 = arith.constant 0 : index
    %c0_2 = arith.constant 0 : index
    %3 = vector.load %arg2[%c0, %c0_1, %c0_2] : memref<1x8x128xf32, #tpu.memory_space<vmem>>, vector<1x8x128xf32>
    %4 = vector.shape_cast %3 : vector<1x8x128xf32> to vector<8x128xf32>
    %c0_3 = arith.constant 0 : index
    %c0_4 = arith.constant 0 : index
    %c0_5 = arith.constant 0 : index
    %5 = vector.load %arg3[%c0_3, %c0_4, %c0_5] : memref<1x128x128xf32, #tpu.memory_space<vmem>>, vector<1x128x128xf32>
    %6 = vector.shape_cast %5 : vector<1x128x128xf32> to vector<128x128xf32>
    %7 = arith.negf %4 : vector<8x128xf32>
    %8 = math.exp %7 : vector<8x128xf32>
    %cst = arith.constant 1.000000e+00 : f32
    %9 = vector.broadcast %cst : f32 to vector<8x128xf32>
    %10 = arith.addf %9, %8 : vector<8x128xf32>
    %11 = arith.divf %9, %10 : vector<8x128xf32>
    %cst_6 = arith.constant 0.000000e+00 : f32
    %12 = vector.broadcast %cst_6 : f32 to vector<8x128xf32>
    %13 = arith.maximumf %4, %12 : vector<8x128xf32>
    %14 = math.absf %4 : vector<8x128xf32>
    %cst_7 = arith.constant 0.000000e+00 : f32
    %15 = vector.broadcast %cst_7 : f32 to vector<8x128xf32>
    %16 = arith.subf %15, %14 : vector<8x128xf32>
    %17 = math.exp %16 : vector<8x128xf32>
    %18 = math.log1p %17 : vector<8x128xf32>
    %19 = arith.addf %13, %18 : vector<8x128xf32>
    %cst_8 = arith.constant 0.000000e+00 : f32
    %20 = vector.broadcast %cst_8 : f32 to vector<8x128xf32>
    %21 = arith.subf %20, %4 : vector<8x128xf32>
    %22 = tpu.concatenate %21, %11 in 0 : vector<8x128xf32>, vector<8x128xf32> -> vector<16x128xf32>
    %23 = arith.truncf %22 : vector<16x128xf32> to vector<16x128xbf16>
    %c0_9 = arith.constant 0 : index
    %c0_10 = arith.constant 0 : index
    %24 = vector.load %arg7[%c0_9, %c0_10] : memref<16x128xf32, #tpu.memory_space<vmem>>, vector<16x128xf32>
    %25 = arith.truncf %6 : vector<128x128xf32> to vector<128x128xbf16>
    %cst_11 = arith.constant dense<0.000000e+00> : vector<16x128xf32>
    %26 = tpu.matmul %23, %25, %cst_11 {dimension_numbers = #tpu.dot_dimension_numbers<[1], [1], [0], [0], [0, 0, 1, 0], [], []>} : vector<16x128xbf16>, vector<128x128xbf16>, vector<16x128xf32> -> vector<16x128xf32>
    %27 = arith.addf %24, %26 : vector<16x128xf32>
    %c0_12 = arith.constant 0 : index
    %c0_13 = arith.constant 0 : index
    %28 = vector.load %arg7[%c0_12, %c0_13] : memref<16x128xf32, #tpu.memory_space<vmem>>, vector<16x128xf32>
    tpu.vector_store %arg7[%c0_12, %c0_13], %27 {strides = array<i32>} : memref<16x128xf32, #tpu.memory_space<vmem>>, vector<16x128xf32>,
    %c0_14 = arith.constant 0 : index
    %c0_15 = arith.constant 0 : index
    %29 = vector.load %arg8[%c0_14, %c0_15] : memref<8x1xf32, #tpu.memory_space<vmem>>, vector<8x1xf32>
    %cst_16 = arith.constant dense<0.000000e+00> : vector<8xf32>
    %30 = vector.multi_reduction <add>, %19, %cst_16 [1] : vector<8x128xf32> to vector<8xf32>
    %31 = vector.shape_cast %30 : vector<8xf32> to vector<8x1xf32>
    %32 = arith.addf %29, %31 : vector<8x1xf32>
    %c0_17 = arith.constant 0 : index
    %c0_18 = arith.constant 0 : index
    %33 = vector.load %arg8[%c0_17, %c0_18] : memref<8x1xf32, #tpu.memory_space<vmem>>, vector<8x1xf32>
    tpu.vector_store %arg8[%c0_17, %c0_18], %32 {strides = array<i32>} : memref<8x1xf32, #tpu.memory_space<vmem>>, vector<8x1xf32>,
    %c0_19 = arith.constant 0 : index
    %c0_20 = arith.constant 0 : index
    %34 = vector.load %arg9[%c0_19, %c0_20] : memref<8x1xf32, #tpu.memory_space<vmem>>, vector<8x1xf32>
    %cst_21 = arith.constant dense<0.000000e+00> : vector<8xf32>
    %35 = vector.multi_reduction <add>, %11, %cst_21 [1] : vector<8x128xf32> to vector<8xf32>
    %36 = vector.shape_cast %35 : vector<8xf32> to vector<8x1xf32>
    %37 = arith.addf %34, %36 : vector<8x1xf32>
    %c0_22 = arith.constant 0 : index
    %c0_23 = arith.constant 0 : index
    %38 = vector.load %arg9[%c0_22, %c0_23] : memref<8x1xf32, #tpu.memory_space<vmem>>, vector<8x1xf32>
    tpu.vector_store %arg9[%c0_22, %c0_23], %37 {strides = array<i32>} : memref<8x1xf32, #tpu.memory_space<vmem>>, vector<8x1xf32>,
    %c0_24 = arith.constant 0 : index
    %c0_25 = arith.constant 0 : index
    %39 = vector.load %arg10[%c0_24, %c0_25] : memref<1x128xf32, #tpu.memory_space<vmem>>, vector<1x128xf32>
    %cst_26 = arith.constant dense<0.000000e+00> : vector<128xf32>
    %40 = vector.multi_reduction <add>, %6, %cst_26 [1] : vector<128x128xf32> to vector<128xf32>
    %41 = vector.shape_cast %40 : vector<128xf32> to vector<1x128xf32>
    %42 = arith.addf %39, %41 : vector<1x128xf32>
    %c0_27 = arith.constant 0 : index
    %c0_28 = arith.constant 0 : index
    %43 = vector.load %arg10[%c0_27, %c0_28] : memref<1x128xf32, #tpu.memory_space<vmem>>, vector<1x128xf32>
    tpu.vector_store %arg10[%c0_27, %c0_28], %42 {strides = array<i32>} : memref<1x128xf32, #tpu.memory_space<vmem>>, vector<1x128xf32>,
    %c0_i32_29 = arith.constant 0 : i32
    %44 = arith.cmpi eq, %arg1, %c0_i32_29 : i32
    %45 = arith.extui %44 : i1 to i32
    %c0_i32_30 = arith.constant 0 : i32
    %46 = arith.cmpi ne, %45, %c0_i32_30 : i32
    scf.if %46 {
      %c0_31 = arith.constant 0 : index
      %c0_32 = arith.constant 0 : index
      %47 = vector.load %arg7[%c0_31, %c0_32] : memref<16x128xf32, #tpu.memory_space<vmem>>, vector<8x128xf32>
      %c8 = arith.constant 8 : index
      %c0_33 = arith.constant 0 : index
      %48 = vector.load %arg7[%c8, %c0_33] : memref<16x128xf32, #tpu.memory_space<vmem>>, vector<8x128xf32>
      %c0_34 = arith.constant 0 : index
      %c0_35 = arith.constant 0 : index
      %49 = vector.load %arg8[%c0_34, %c0_35] : memref<8x1xf32, #tpu.memory_space<vmem>>, vector<8x1xf32>
      %50 = vector.broadcast %49 : vector<8x1xf32> to vector<8x128xf32>
      %51 = arith.addf %47, %50 : vector<8x128xf32>
      %cst_36 = arith.constant 7.812500e-03 : f32
      %52 = vector.broadcast %cst_36 : f32 to vector<8x128xf32>
      %53 = arith.mulf %51, %52 : vector<8x128xf32>
      %c0_37 = arith.constant 0 : index
      %c0_38 = arith.constant 0 : index
      %54 = vector.load %arg9[%c0_37, %c0_38] : memref<8x1xf32, #tpu.memory_space<vmem>>, vector<8x1xf32>
      %c0_39 = arith.constant 0 : index
      %c0_40 = arith.constant 0 : index
      %55 = vector.load %arg10[%c0_39, %c0_40] : memref<1x128xf32, #tpu.memory_space<vmem>>, vector<1x128xf32>
      %56 = vector.broadcast %54 : vector<8x1xf32> to vector<8x128xf32>
      %57 = vector.broadcast %55 : vector<1x128xf32> to vector<8x128xf32>
      %58 = arith.addf %56, %57 : vector<8x128xf32>
      %cst_41 = arith.constant 1.000000e+00 : f32
      %59 = vector.broadcast %cst_41 : f32 to vector<8x128xf32>
      %60 = arith.addf %58, %59 : vector<8x128xf32>
      %cst_42 = arith.constant 2.000000e+00 : f32
      %61 = vector.broadcast %cst_42 : f32 to vector<8x128xf32>
      %62 = arith.mulf %61, %48 : vector<8x128xf32>
      %cst_43 = arith.constant 1.000000e+00 : f32
      %63 = vector.broadcast %cst_43 : f32 to vector<8x128xf32>
      %64 = arith.addf %62, %63 : vector<8x128xf32>
      %65 = tpu.reciprocal %60 {approx = true} : vector<8x128xf32> -> vector<8x128xf32>
      %66 = arith.mulf %64, %65 : vector<8x128xf32>
      %cst_44 = arith.constant 1.000000e+00 : f32
      %67 = vector.broadcast %cst_44 : f32 to vector<8x128xf32>
      %68 = arith.subf %67, %66 : vector<8x128xf32>
      %cst_45 = arith.constant 5.000000e+00 : f32
      %69 = vector.broadcast %cst_45 : f32 to vector<8x128xf32>
      %70 = arith.mulf %69, %53 : vector<8x128xf32>
      %c0_46 = arith.constant 0 : index
      %c0_47 = arith.constant 0 : index
      %c0_48 = arith.constant 0 : index
      %71 = vector.load %arg4[%c0_46, %c0_47, %c0_48] : memref<1x8x128xf32, #tpu.memory_space<vmem>>, vector<1x8x128xf32>
      %72 = vector.shape_cast %71 : vector<1x8x128xf32> to vector<8x128xf32>
      %cst_49 = arith.constant 2.000000e+00 : f32
      %73 = vector.broadcast %cst_49 : f32 to vector<8x128xf32>
      %74 = arith.mulf %73, %72 : vector<8x128xf32>
      %75 = arith.addf %70, %74 : vector<8x128xf32>
      %cst_50 = arith.constant 5.000000e+00 : f32
      %76 = vector.broadcast %cst_50 : f32 to vector<8x128xf32>
      %77 = arith.mulf %76, %68 : vector<8x128xf32>
      %78 = arith.addf %75, %77 : vector<8x128xf32>
      %c0_51 = arith.constant 0 : index
      %c0_52 = arith.constant 0 : index
      %c0_53 = arith.constant 0 : index
      %79 = vector.load %arg5[%c0_51, %c0_52, %c0_53] : memref<1x1x128xf32, #tpu.memory_space<vmem>>, vector<1x1x128xf32>
      %80 = vector.shape_cast %79 : vector<1x1x128xf32> to vector<1x128xf32>
      %cst_54 = arith.constant 5.000000e-01 : f32
      %81 = vector.broadcast %cst_54 : f32 to vector<1x128xf32>
      %82 = arith.cmpf ogt, %80, %81 : vector<1x128xf32>
      %cst_55 = arith.constant 1.000000e+06 : f32
      %83 = vector.shape_cast %82 : vector<1x128xi1> to vector<1x128xi1>
      %84 = vector.broadcast %83 : vector<1x128xi1> to vector<8x128xi1>
      %85 = vector.broadcast %cst_55 : f32 to vector<8x128xf32>
      %86 = arith.select %84, %78, %85 : vector<8x128xi1>, vector<8x128xf32>
      %c0_56 = arith.constant 0 : index
      %c0_57 = arith.constant 0 : index
      %c0_58 = arith.constant 0 : index
      %87 = vector.load %arg6[%c0_56, %c0_57, %c0_58] : memref<1x8x128xf32, #tpu.memory_space<vmem>>, vector<1x8x128xf32>
      %88 = vector.shape_cast %87 : vector<1x8x128xf32> to vector<8x128xf32>
      %89 = vector.shape_cast %86 : vector<8x128xf32> to vector<1x8x128xf32>
      tpu.vector_store %arg6[%c0_56, %c0_57, %c0_58], %89 {strides = array<i32>} : memref<1x8x128xf32, #tpu.memory_space<vmem>>, vector<1x8x128xf32>,
    } else {
    }
    return
  }
  func.func @transform_0(%arg0: i32, %arg1: i32) -> (i32, i32, i32) {
    %c0_i32 = arith.constant 0 : i32
    %c0_i32_0 = arith.constant 0 : i32
    return %arg0, %c0_i32, %arg1 : i32, i32, i32
  }
  func.func @transform_1(%arg0: i32, %arg1: i32) -> (i32, i32, i32) {
    %c0_i32 = arith.constant 0 : i32
    %c0_i32_0 = arith.constant 0 : i32
    return %arg0, %c0_i32, %arg1 : i32, i32, i32
  }
  func.func @transform_2(%arg0: i32, %arg1: i32) -> (i32, i32, i32) {
    %c0_i32 = arith.constant 0 : i32
    %c0_i32_0 = arith.constant 0 : i32
    %c0_i32_1 = arith.constant 0 : i32
    return %arg0, %c0_i32, %c0_i32_0 : i32, i32, i32
  }
  func.func @transform_3(%arg0: i32, %arg1: i32) -> (i32, i32, i32) {
    %c0_i32 = arith.constant 0 : i32
    %c0_i32_0 = arith.constant 0 : i32
    %c0_i32_1 = arith.constant 0 : i32
    return %arg0, %c0_i32, %c0_i32_0 : i32, i32, i32
  }
  func.func @transform_4(%arg0: i32, %arg1: i32) -> (i32, i32, i32) {
    %c0_i32 = arith.constant 0 : i32
    %c0_i32_0 = arith.constant 0 : i32
    %c0_i32_1 = arith.constant 0 : i32
    return %arg0, %c0_i32, %c0_i32_0 : i32, i32, i32
  }
}

</mosaic_0001>

<llo_original>
// kernel: tpu_custom_call.1
$region0: #{tpu_custom_call.1}
  #allocation0 [shape = 'u32[]', space=smem, size = 0x4, offset = 0x4, fixed_abs, tag = 'smem constant byte address 0x4 - core index']
  #allocation1 [shape = 'u32[144,128]{1,0:T(1,128)}', space=vmem, size = 0x12000, scoped, tag = 'internal scratch']
  #allocation2 [shape = 'f32[16,128]{1,0:T(8,128)}', space=vmem, size = 0x2000, scoped, tag = 'scratch operand']
  #allocation3 [shape = 'f32[8,1]{1,0:T(8,128)}', space=vmem, size = 0x1000, scoped, tag = 'scratch operand']
  #allocation4 [shape = 'f32[8,1]{1,0:T(8,128)}', space=vmem, size = 0x1000, scoped, tag = 'scratch operand']
  #allocation5 [shape = 'f32[1,128]{1,0:T(1,128)}', space=vmem, size = 0x200, scoped, tag = 'scratch operand']
  %s0 = inlined_call_operand.hbm [shape: f32[2,8,128], index: 0, kind: input, shape index: {}]
  %s1 = inlined_call_operand.hbm [shape: f32[2,128,128], index: 1, kind: input, shape index: {}]
  %s2 = inlined_call_operand.hbm [shape: f32[2,8,128], index: 2, kind: input, shape index: {}]
  %s3 = inlined_call_operand.vmem [shape: f32[2,1,128], index: 3, kind: input, shape index: {}]
  %s4 = inlined_call_operand.hbm [shape: f32[2,8,128], index: 4, kind: output, shape index: {}]
  %s5 = sld [smem:[#allocation0]]
  $region69: #{tpu_custom_call.1} parent=0
    _
  %s7 = ssub.s32 1, %s5
  %s8 = scalar_select 0, %s7, %s5
  $region1: #{tpu_custom_call.1} parent=0
    #allocation6 [shape = 'u8[8192]{0}', space=vmem, size = 0x2000, scoped, tag = 'input window, operand 0']
    #allocation7 [shape = 's32[2]{0}', space=sflag, size = 0x8, scoped, tag = 'scoped memory for tpu_custom_call.1']
    #allocation8 [shape = 's32[2]{0}', space=sflag, size = 0x8, scoped, tag = 'scoped memory for tpu_custom_call.1']
    #allocation9 [shape = 'u8[131072]{0}', space=vmem, size = 0x20000, scoped, tag = 'input window, operand 1']
    #allocation10 [shape = 's32[2]{0}', space=sflag, size = 0x8, scoped, tag = 'scoped memory for tpu_custom_call.1']
    #allocation11 [shape = 'u8[8192]{0}', space=vmem, size = 0x2000, scoped, tag = 'input window, operand 2']
    #allocation12 [shape = 'u8[8192]{0}', space=vmem, size = 0x2000, scoped, tag = 'output window, operand 0']
    %9 = vsyncpa [#allocation7], 0
    %s10 = scalar_lea.sflag [#allocation7], 1
    %11 = vsyncpa %s10, 0
    %12 = vsyncpa [#allocation10], 0
    %s13 = scalar_lea.sflag [#allocation10], 1
    %14 = vsyncpa %s13, 0
    %15 = vsyncpa [#allocation8], 0
    %s16 = scalar_lea.sflag [#allocation8], 1
    %17 = vsyncpa %s16, 0
    loop: start=0, step=1, limit=4
    $region2: #{tpu_custom_call.1} parent=1 // loop_pre_header
      _
    $region3: #{tpu_custom_call.1} parent=1 // loop_header
      %s19 = sphi 0, %s23
      %p20 = scmp.ge.s32.totalorder %s19, 4
      %s26 = sphi 0, %s38
      %s27 = sphi 0, %s34
      %s28 = sphi 0, %s26
      %s29 = sphi 0, %s27
      %s30 = sphi 0, %s28
      %s31 = sphi 0, %s29
      %s43 = sphi 0, %s45
      %s46 = sphi 0, %s43
      %s47 = sphi 0, %s46
      %s63 = sphi 0, %s47
      %s71 = sphi 0, %s73
      %s74 = sphi 0, %s71
      %s75 = sphi 0, %s74
      %s91 = sphi 0, %s75
      %s97 = sphi 0, %s99
      %s100 = sphi 0, %s97
      %s101 = sphi 0, %s100
      %s117 = sphi 0, %s101
      %s123 = sphi 0, %s125
      %s126 = sphi 0, %s123
      %s127 = sphi 0, %s126
      %s143 = sphi 0, %s127
      %s149 = sphi 0, %s151
      %s152 = sphi 0, %s149
      %s153 = sphi 0, %s152
      %s169 = sphi 0, %s153
    $region4: #{tpu_custom_call.1} parent=1 // loop_header_branch
      %22 = sbr.rel (%p20) target = $region8
    $region5: #{tpu_custom_call.1} parent=1 // loop_body
      %s24 = ssub.s32 %s19, 1
      %s25 = ssub.s32 %s19, 2
      %s32 = sadd.s32 1, %s27
      %p33 = scmp.ge.s32.totalorder %s32, 1
      %s34 = scalar_select %p33, 0, %s32
      %s35 = sadd.s32 1, %s26
      %s36 = scalar_select %p33, %s35, %s26
      %p37 = scmp.ge.s32.totalorder %s36, 2
      %s38 = scalar_select %p37, 0, %s36
      %s39 = ssub.s32 %s26, %s38
      %s40 = ssub.s32 %s27, %s34
      %s41 = sor.u32 %s39, %s40
      %p42 = scmp.eq.s32.totalorder %s41, 0
      %s44 = sadd.s32 %s43, 1
      %s45 = scalar_select %p42, %s43, %s44
      %p48 = pneg %p42
      %p49 = scmp.eq.s32.totalorder %s19, 1
      %p50 = por %p48, %p49
      %p51 = scmp.ne.s32.totalorder %s43, %s46
      %p52 = scmp.eq.s32.totalorder %s19, 0
      %p53 = por %p51, %p52
      %p54 = scmp.ne.s32.totalorder %s43, %s46
      %p55 = scmp.eq.s32.totalorder %s24, 1
      %p56 = por %p54, %p55
      %p57 = scmp.ne.s32.totalorder %s46, %s47
      %p58 = scmp.eq.s32.totalorder %s24, 0
      %p59 = por %p57, %p58
      %p60 = scmp.ne.s32.totalorder %s46, %s47
      %p61 = scmp.eq.s32.totalorder %s25, 1
      %p62 = por %p60, %p61
      %p64 = scmp.ne.s32.totalorder %s47, %s63
      %p65 = scmp.eq.s32.totalorder %s25, 0
      %p66 = por %p64, %p65
      %s67 = ssub.s32 %s26, %s38
      %s68 = ssub.s32 %s27, %s34
      %s69 = sor.u32 %s67, %s68
      %p70 = scmp.eq.s32.totalorder %s69, 0
      %s72 = sadd.s32 %s71, 1
      %s73 = scalar_select %p70, %s71, %s72
      %p76 = pneg %p70
      %p77 = scmp.eq.s32.totalorder %s19, 1
      %p78 = por %p76, %p77
      %p79 = scmp.ne.s32.totalorder %s71, %s74
      %p80 = scmp.eq.s32.totalorder %s19, 0
      %p81 = por %p79, %p80
      %p82 = scmp.ne.s32.totalorder %s71, %s74
      %p83 = scmp.eq.s32.totalorder %s24, 1
      %p84 = por %p82, %p83
      %p85 = scmp.ne.s32.totalorder %s74, %s75
      %p86 = scmp.eq.s32.totalorder %s24, 0
      %p87 = por %p85, %p86
      %p88 = scmp.ne.s32.totalorder %s74, %s75
      %p89 = scmp.eq.s32.totalorder %s25, 1
      %p90 = por %p88, %p89
      %p92 = scmp.ne.s32.totalorder %s75, %s91
      %p93 = scmp.eq.s32.totalorder %s25, 0
      %p94 = por %p92, %p93
      %s95 = ssub.s32 %s26, %s38
      %p96 = scmp.eq.s32.totalorder %s95, 0
      %s98 = sadd.s32 %s97, 1
      %s99 = scalar_select %p96, %s97, %s98
      %p102 = pneg %p96
      %p103 = scmp.eq.s32.totalorder %s19, 1
      %p104 = por %p102, %p103
      %p105 = scmp.ne.s32.totalorder %s97, %s100
      %p106 = scmp.eq.s32.totalorder %s19, 0
      %p107 = por %p105, %p106
      %p108 = scmp.ne.s32.totalorder %s97, %s100
      %p109 = scmp.eq.s32.totalorder %s24, 1
      %p110 = por %p108, %p109
      %p111 = scmp.ne.s32.totalorder %s100, %s101
      %p112 = scmp.eq.s32.totalorder %s24, 0
      %p113 = por %p111, %p112
      %p114 = scmp.ne.s32.totalorder %s100, %s101
      %p115 = scmp.eq.s32.totalorder %s25, 1
      %p116 = por %p114, %p115
      %p118 = scmp.ne.s32.totalorder %s101, %s117
      %p119 = scmp.eq.s32.totalorder %s25, 0
      %p120 = por %p118, %p119
      %s121 = ssub.s32 %s26, %s38
      %p122 = scmp.eq.s32.totalorder %s121, 0
      %s124 = sadd.s32 %s123, 1
      %s125 = scalar_select %p122, %s123, %s124
      %p128 = pneg %p122
      %p129 = scmp.eq.s32.totalorder %s19, 1
      %p130 = por %p128, %p129
      %p131 = scmp.ne.s32.totalorder %s123, %s126
      %p132 = scmp.eq.s32.totalorder %s19, 0
      %p133 = por %p131, %p132
      %p134 = scmp.ne.s32.totalorder %s123, %s126
      %p135 = scmp.eq.s32.totalorder %s24, 1
      %p136 = por %p134, %p135
      %p137 = scmp.ne.s32.totalorder %s126, %s127
      %p138 = scmp.eq.s32.totalorder %s24, 0
      %p139 = por %p137, %p138
      %p140 = scmp.ne.s32.totalorder %s126, %s127
      %p141 = scmp.eq.s32.totalorder %s25, 1
      %p142 = por %p140, %p141
      %p144 = scmp.ne.s32.totalorder %s127, %s143
      %p145 = scmp.eq.s32.totalorder %s25, 0
      %p146 = por %p144, %p145
      %s147 = ssub.s32 %s26, %s38
      %p148 = scmp.eq.s32.totalorder %s147, 0
      %s150 = sadd.s32 %s149, 1
      %s151 = scalar_select %p148, %s149, %s150
      %p154 = pneg %p148
      %p155 = scmp.eq.s32.totalorder %s19, 1
      %p156 = por %p154, %p155
      %p157 = scmp.ne.s32.totalorder %s149, %s152
      %p158 = scmp.eq.s32.totalorder %s19, 0
      %p159 = por %p157, %p158
      %p160 = scmp.ne.s32.totalorder %s149, %s152
      %p161 = scmp.eq.s32.totalorder %s24, 1
      %p162 = por %p160, %p161
      %p163 = scmp.ne.s32.totalorder %s152, %s153
      %p164 = scmp.eq.s32.totalorder %s24, 0
      %p165 = por %p163, %p164
      %p166 = scmp.ne.s32.totalorder %s152, %s153
      %p167 = scmp.eq.s32.totalorder %s25, 1
      %p168 = por %p166, %p167
      %p170 = scmp.ne.s32.totalorder %s153, %s169
      %p171 = scmp.eq.s32.totalorder %s25, 0
      %p172 = por %p170, %p171
      %p173 = scmp.le.s32.totalorder 1, %s19
      %p174 = scmp.lt.s32.totalorder %s19, 3
      %p175 = pnand %p173, %p174
      %p176 = pneg %p175
      // Predicated region
      $region9: #{tpu_custom_call.1} parent=5 // pred_check
        _
      $region10: #{tpu_custom_call.1} parent=5 // pred_check_branch
        %178 = sbr.rel (%p175) target = $region12
      $region11: #{tpu_custom_call.1} parent=5 // pred_region
        %s179 = ssub.s32 %s19, 1
      $region12: #{tpu_custom_call.1} parent=5 // pred_fallthru
        _
      %p180 = scmp.lt.s32.totalorder %s19, 2
      // Predicated region
      $region13: #{tpu_custom_call.1} parent=5 // pred_check
        %p181 = pneg %p180
      $region14: #{tpu_custom_call.1} parent=5 // pred_check_branch
        %183 = sbr.rel (%p181) target = $region16
      $region15: #{tpu_custom_call.1} parent=5 // pred_region
        // Predicated region
        $region17: #{tpu_custom_call.1} parent=15 // pred_check
          %p184 = pneg %p53
        $region18: #{tpu_custom_call.1} parent=15 // pred_check_branch
          %186 = sbr.rel (%p184) target = $region20
        $region19: #{tpu_custom_call.1} parent=15 // pred_region
          %s187 = sand.u32 %s43, 1
          %s188 = scalar_lea.sflag [#allocation7], %s187
          %s189 = sand.u32 %s43, 1
          %s190 = smul.addr %s189, 8
          %s191 = scalar_lea.vmem [#allocation6], %s190
          %s193 = ssub.s32 128, 128
          %194 = vsyncadd %s188, %s193
          %s195 = sadd.s32 %s27, %s26
          %s196 = smul.addr %s195, 128
          %s197 = scalar_lea.hbm %s0, %s196
          %s199 = sshll.u32 %s191, 4
          %s200 = int_to_ptr.vmem [resolvable:$true] %s199
          %202 = dma.hbm_to_vmem [thread:$0]  %s197, 128, %s200, %s188
        $region20: #{tpu_custom_call.1} parent=15 // pred_fallthru
          _
        // Predicated region
        $region21: #{tpu_custom_call.1} parent=15 // pred_check
          %p203 = pneg %p81
        $region22: #{tpu_custom_call.1} parent=15 // pred_check_branch
          %205 = sbr.rel (%p203) target = $region24
        $region23: #{tpu_custom_call.1} parent=15 // pred_region
          %s206 = sand.u32 %s19, 1
          %s207 = scalar_lea.sflag [#allocation10], %s206
          %s208 = sand.u32 %s71, 1
          %s209 = smul.addr %s208, 128
          %s210 = scalar_lea.vmem [#allocation9], %s209
          %s212 = ssub.s32 2048, 2048
          %213 = vsyncadd %s207, %s212
          %s214 = smul.addr %s26, 16
          %s215 = sadd.s32 %s27, %s214
          %s216 = smul.addr %s215, 128
          %s217 = scalar_lea.hbm %s1, %s216
          %s218 = sshll.u32 %s210, 4
          %s219 = int_to_ptr.vmem [resolvable:$true] %s218
          %224 = dma.hbm_to_vmem [thread:$0]  %s217, 2048, %s219, %s207, 128, 128, 8
        $region24: #{tpu_custom_call.1} parent=15 // pred_fallthru
          _
        // Predicated region
        $region25: #{tpu_custom_call.1} parent=15 // pred_check
          %p225 = pneg %p107
        $region26: #{tpu_custom_call.1} parent=15 // pred_check_branch
          %227 = sbr.rel (%p225) target = $region28
        $region27: #{tpu_custom_call.1} parent=15 // pred_region
          %s228 = sand.u32 %s19, 1
          %s229 = scalar_lea.sflag [#allocation10], %s228
          %s230 = sand.u32 %s97, 1
          %s231 = smul.addr %s230, 8
          %s232 = scalar_lea.vmem [#allocation11], %s231
          %s234 = ssub.s32 128, 128
          %235 = vsyncadd %s229, %s234
          %s236 = smul.addr %s26, 128
          %s237 = scalar_lea.hbm %s2, %s236
          %s239 = sshll.u32 %s232, 4
          %s240 = int_to_ptr.vmem [resolvable:$true] %s239
          %242 = dma.hbm_to_vmem [thread:$0]  %s237, 128, %s240, %s229
        $region28: #{tpu_custom_call.1} parent=15 // pred_fallthru
          _
        // Predicated region
        $region29: #{tpu_custom_call.1} parent=15 // pred_check
          %p243 = pneg %p133
        $region30: #{tpu_custom_call.1} parent=15 // pred_check_branch
          %245 = sbr.rel (%p243) target = $region32
        $region31: #{tpu_custom_call.1} parent=15 // pred_region
          %p246 = scmp.lt.s32.totalorder %s26, 1
          %s247 = scalar_select %p246, %s26, 1
          %s248 = scalar_lea.vmem %s3, %s247
        $region32: #{tpu_custom_call.1} parent=15 // pred_fallthru
          _
      $region16: #{tpu_custom_call.1} parent=5 // pred_fallthru
        _
      %p249 = scmp.le.s32.totalorder 1, %s19
      %p250 = scmp.lt.s32.totalorder %s19, 3
      %p251 = pnand %p249, %p250
      %p252 = pneg %p251
      // Predicated region
      $region33: #{tpu_custom_call.1} parent=5 // pred_check
        _
      $region34: #{tpu_custom_call.1} parent=5 // pred_check_branch
        %254 = sbr.rel (%p251) target = $region36
      $region35: #{tpu_custom_call.1} parent=5 // pred_region
        %s255 = ssub.s32 %s19, 1
        %s256 = sand.u32 %s46, 1
        %s257 = scalar_lea.sflag [#allocation7], %s256
        %s258 = sand.u32 %s46, 1
        %s259 = smul.addr %s258, 8
        %s260 = scalar_lea.vmem [#allocation6], %s259
        // Predicated region
        $region37: #{tpu_custom_call.1} parent=35 // pred_check
          %p261 = pneg %p59
        $region38: #{tpu_custom_call.1} parent=35 // pred_check_branch
          %263 = sbr.rel (%p261) target = $region40
        $region39: #{tpu_custom_call.1} parent=35 // pred_region
          %264 = dma.done %s257, 128
        $region40: #{tpu_custom_call.1} parent=35 // pred_fallthru
          _
        %s265 = sand.u32 %s24, 1
        %s266 = scalar_lea.sflag [#allocation10], %s265
        %s267 = sand.u32 %s74, 1
        %s268 = smul.addr %s267, 128
        %s269 = scalar_lea.vmem [#allocation9], %s268
        // Predicated region
        $region41: #{tpu_custom_call.1} parent=35 // pred_check
          %p270 = pneg %p87
        $region42: #{tpu_custom_call.1} parent=35 // pred_check_branch
          %272 = sbr.rel (%p270) target = $region44
        $region43: #{tpu_custom_call.1} parent=35 // pred_region
          %273 = dma.done %s266, 2048
        $region44: #{tpu_custom_call.1} parent=35 // pred_fallthru
          _
        %s274 = sand.u32 %s24, 1
        %s275 = scalar_lea.sflag [#allocation10], %s274
        %s276 = sand.u32 %s100, 1
        %s277 = smul.addr %s276, 8
        %s278 = scalar_lea.vmem [#allocation11], %s277
        // Predicated region
        $region45: #{tpu_custom_call.1} parent=35 // pred_check
          %p279 = pneg %p113
        $region46: #{tpu_custom_call.1} parent=35 // pred_check_branch
          %281 = sbr.rel (%p279) target = $region48
        $region47: #{tpu_custom_call.1} parent=35 // pred_region
          %282 = dma.done %s275, 128
        $region48: #{tpu_custom_call.1} parent=35 // pred_fallthru
          _
        %s283 = sand.u32 %s46, 1
        %s284 = scalar_lea.sflag [#allocation7], %s283
        %s285 = sand.u32 %s46, 1
        %s286 = smul.addr %s285, 8
        %s287 = scalar_lea.vmem [#allocation6], %s286
        %p288 = pneg %p59
        %p289 = pneg %p56
        %s290 = sand.u32 %s24, 1
        %s291 = scalar_lea.sflag [#allocation10], %s290
        %s292 = sand.u32 %s74, 1
        %s293 = smul.addr %s292, 128
        %s294 = scalar_lea.vmem [#allocation9], %s293
        %p295 = pneg %p87
        %p296 = pneg %p84
        %s297 = sand.u32 %s24, 1
        %s298 = scalar_lea.sflag [#allocation10], %s297
        %s299 = sand.u32 %s100, 1
        %s300 = smul.addr %s299, 8
        %s301 = scalar_lea.vmem [#allocation11], %s300
        %p302 = pneg %p113
        %p303 = pneg %p110
        %p304 = scmp.lt.s32.totalorder %s28, 1
        %s305 = scalar_select %p304, %s28, 1
        %s306 = scalar_lea.vmem %s3, %s305
        %p307 = pneg %p139
        %p308 = pneg %p136
        %p309 = pneg %p165
        %p310 = pneg %p162
        %s311 = sand.u32 %s152, 1
        %s312 = scalar_lea.sflag [#allocation8], %s311
        %s313 = sand.u32 %s152, 1
        %s314 = smul.addr %s313, 8
        %s315 = scalar_lea.vmem [#allocation12], %s314
        %p316 = scmp.lt.s32.totalorder %s28, 1
        %s317 = scalar_select %p316, %s28, 1
        %s318 = scalar_lea.vmem %s3, %s317
        %p320 = scmp.eq.s32.totalorder %s29, 0
        // Predicated region
        $region49: #{tpu_custom_call.1} parent=35 // pred_check
          %p321 = pneg %p320
        $region50: #{tpu_custom_call.1} parent=35 // pred_check_branch
          %323 = sbr.rel (%p321) target = $region52
        $region51: #{tpu_custom_call.1} parent=35 // pred_region
          %324 = vst [vmem:[#allocation2] sm:$0xff] 0.0
          %325 = vst [vmem:[#allocation2 + $0x8] sm:$0xff] 0.0
          %vm326 = vcmask 7168
          %327 = vst.msk [vmem:[#allocation3] sm:$0xff] %vm326, 0.0
          %328 = vst.msk [vmem:[#allocation4] sm:$0xff] %vm326, 0.0
          %329 = vst [vmem:[#allocation5] sm:$0x1] 0.0
        $region52: #{tpu_custom_call.1} parent=35 // pred_fallthru
          _
        %v330 = vld [vmem:[%s260] sm:$0xff]
        %v331 = vld [vmem:[%s269] sm:$0xff]
        %v332 = vld [vmem:[%s269 + $0x8] sm:$0xff]
        %v333 = vld [vmem:[%s269 + $0x10] sm:$0xff]
        %v334 = vld [vmem:[%s269 + $0x18] sm:$0xff]
        %v335 = vld [vmem:[%s269 + $0x20] sm:$0xff]
        %v336 = vld [vmem:[%s269 + $0x28] sm:$0xff]
        %v337 = vld [vmem:[%s269 + $0x30] sm:$0xff]
        %v338 = vld [vmem:[%s269 + $0x38] sm:$0xff]
        %v339 = vld [vmem:[%s269 + $0x40] sm:$0xff]
        %v340 = vld [vmem:[%s269 + $0x48] sm:$0xff]
        %v341 = vld [vmem:[%s269 + $0x50] sm:$0xff]
        %v342 = vld [vmem:[%s269 + $0x58] sm:$0xff]
        %v343 = vld [vmem:[%s269 + $0x60] sm:$0xff]
        %v344 = vld [vmem:[%s269 + $0x68] sm:$0xff]
        %v345 = vld [vmem:[%s269 + $0x70] sm:$0xff]
        %v346 = vld [vmem:[%s269 + $0x78] sm:$0xff]
        %v347 = vxor.u32 %v330, 2147483648
        %v348 = vmul.f32 %v347, 1.442695
        %v349 = vpow.pop %v348
        %v350 = vadd.f32 %v349, 1.0
        %v351 = vrcp.pop %v350
        %v352 = vmul.f32 1.0, %v351
        %v353 = vmax.f32 %v330, 0.0
        %v354 = vand.u32 2147483647, %v330
        %v355 = vsub.f32 0.0, %v354
        %v356 = vmul.f32 %v355, 1.442695
        %v357 = vpow.pop %v356
        %v358 = vadd.f32 %v357, 1.0
        %v359 = vlog2.pop %v358
        %v360 = vmul.f32 %v359, 0.6931472
        %v361 = vmul.f32 -0.5, %v357
        %v362 = vadd.f32 %v361, 1.0
        %v363 = vmul.f32 %v362, %v357
        %v364 = vand.u32 2147483647, %v357
        %vm365 = vcmp.lt.f32.partialorder %v364, 0.0004427343
        %v366 = vsel %vm365, %v363, %v360
        %v367 = vadd.f32 %v353, %v366
        %v368 = vsub.f32 0.0, %v330
        %v369 = vpack.c.bf16 %v352, %v368
        %v370 = vld [vmem:[#allocation2] sm:$0xff]
        %v371 = vld [vmem:[#allocation2 + $0x8] sm:$0xff]
        %v372 = vpack.c.bf16 %v332, %v331
        %v373 = vpack.c.bf16 %v334, %v333
        %v374 = vpack.c.bf16 %v336, %v335
        %v375 = vpack.c.bf16 %v338, %v337
        %v376 = vpack.c.bf16 %v340, %v339
        %v377 = vpack.c.bf16 %v342, %v341
        %v378 = vpack.c.bf16 %v344, %v343
        %v379 = vpack.c.bf16 %v346, %v345
        %380 = vmatprep.subr.bf16.mxu0 0
        %381 = vmatpush1.bf16.xpose.msra.mxu0 %v372
        %382 = vmatprep.subr.bf16.mxu0 0
        %383 = vmatpush1.bf16.xpose.msra.mxu0 %v373
        %384 = vmatprep.subr.bf16.mxu0 0
        %385 = vmatpush1.bf16.xpose.msra.mxu0 %v374
        %386 = vmatprep.subr.bf16.mxu0 0
        %387 = vmatpush1.bf16.xpose.msra.mxu0 %v375
        %388 = vmatprep.subr.bf16.mxu0 0
        %389 = vmatpush1.bf16.xpose.msra.mxu0 %v376
        %390 = vmatprep.subr.bf16.mxu0 0
        %391 = vmatpush1.bf16.xpose.msra.mxu0 %v377
        %392 = vmatprep.subr.bf16.mxu0 0
        %393 = vmatpush1.bf16.xpose.msra.mxu0 %v378
        %394 = vmatprep.subr.bf16.mxu0 0
        %395 = vmatpush1.bf16.xpose.msra.mxu0 %v379
        %396 = vmatprep.subr.bf16.mxu0 0
        %397 = vmatpush1.bf16.xpose.msra.mxu0 0
        %398 = vmatprep.subr.bf16.mxu0 0
        %399 = vmatpush1.bf16.xpose.msra.mxu0 0
        %400 = vmatprep.subr.bf16.mxu0 0
        %401 = vmatpush1.bf16.xpose.msra.mxu0 0
        %402 = vmatprep.subr.bf16.mxu0 0
        %403 = vmatpush1.bf16.xpose.msra.mxu0 0
        %404 = vmatprep.subr.bf16.mxu0 0
        %405 = vmatpush1.bf16.xpose.msra.mxu0 0
        %406 = vmatprep.subr.bf16.mxu0 0
        %407 = vmatpush1.bf16.xpose.msra.mxu0 0
        %408 = vmatprep.subr.bf16.mxu0 0
        %409 = vmatpush1.bf16.xpose.msra.mxu0 0
        %410 = vmatprep.subr.bf16.mxu0 0
        %411 = vmatpush1.bf16.xpose.msra.mxu0 0
        %412 = vmatprep.mubr.bf16.mxu0 0
        %413 = vmatmul.mubr.bf16.gmra.mrb[0].mxu0 %v369
        %v414 = vpop.f32.mrb[0].mxu0
        %v415 = vadd.f32 0.0, %v414
        %v416 = vpop.f32.mrb[0].mxu0
        %v417 = vpop.f32.mrb[0].mxu0
        %v418 = vadd.f32 0.0, %v417
        %v419 = vpop.f32.mrb[0].mxu0
        %420 = vdwg.mxu0
        %v421 = vadd.f32 %v370, %v415
        %v422 = vadd.f32 %v371, %v418
        %423 = vst [vmem:[#allocation2] sm:$0xff] %v421
        %424 = vst [vmem:[#allocation2 + $0x8] sm:$0xff] %v422
        %v425 = vld [vmem:[#allocation3] sm:$0xff]
        %426 = vadd.xlane.f32.xlu0 %v367
        %v427 = vpop.xlane.xlu0 %426
        %v428 = vadd.f32 %v425, %v427
        %vm429 = vcmask 7168
        %430 = vst.msk [vmem:[#allocation3] sm:$0xff] %vm429, %v428
        %v431 = vld [vmem:[#allocation4] sm:$0xff]
        %432 = vadd.xlane.f32.xlu0 %v352
        %v433 = vpop.xlane.xlu0 %432
        %v434 = vadd.f32 %v431, %v433
        %435 = vst.msk [vmem:[#allocation4] sm:$0xff] %vm429, %v434
        %v436 = vld [vmem:[#allocation5] sm:$0x1]
        %437 = vadd.xlane.f32.xlu0 %v331
        %v438 = vpop.xlane.xlu0 %437
        %439 = vadd.xlane.f32.xlu0 %v332
        %v440 = vpop.xlane.xlu0 %439
        %441 = vadd.xlane.f32.xlu0 %v333
        %v442 = vpop.xlane.xlu0 %441
        %443 = vadd.xlane.f32.xlu0 %v334
        %v444 = vpop.xlane.xlu0 %443
        %445 = vadd.xlane.f32.xlu0 %v335
        %v446 = vpop.xlane.xlu0 %445
        %447 = vadd.xlane.f32.xlu0 %v336
        %v448 = vpop.xlane.xlu0 %447
        %449 = vadd.xlane.f32.xlu0 %v337
        %v450 = vpop.xlane.xlu0 %449
        %451 = vadd.xlane.f32.xlu0 %v338
        %v452 = vpop.xlane.xlu0 %451
        %453 = vadd.xlane.f32.xlu0 %v339
        %v454 = vpop.xlane.xlu0 %453
        %455 = vadd.xlane.f32.xlu0 %v340
        %v456 = vpop.xlane.xlu0 %455
        %457 = vadd.xlane.f32.xlu0 %v341
        %v458 = vpop.xlane.xlu0 %457
        %459 = vadd.xlane.f32.xlu0 %v342
        %v460 = vpop.xlane.xlu0 %459
        %461 = vadd.xlane.f32.xlu0 %v343
        %v462 = vpop.xlane.xlu0 %461
        %463 = vadd.xlane.f32.xlu0 %v344
        %v464 = vpop.xlane.xlu0 %463
        %465 = vadd.xlane.f32.xlu0 %v345
        %v466 = vpop.xlane.xlu0 %465
        %467 = vadd.xlane.f32.xlu0 %v346
        %v468 = vpop.xlane.xlu0 %467
        %v485 = vlaneseq
        %v486 = vshrl.u32 %v485, 7
        %v487 = vsub.s32 0, %v486
        %v488 = vrot.slane %v438, %v487
        %v489 = vlaneseq
        %v490 = vshrl.u32 %v489, 7
        %v491 = vsub.s32 1, %v490
        %v492 = vrot.slane %v438, %v491
        %v493 = vlaneseq
        %v494 = vshrl.u32 %v493, 7
        %v495 = vsub.s32 2, %v494
        %v496 = vrot.slane %v438, %v495
        %v497 = vlaneseq
        %v498 = vshrl.u32 %v497, 7
        %v499 = vsub.s32 3, %v498
        %v500 = vrot.slane %v438, %v499
        %v501 = vlaneseq
        %v502 = vshrl.u32 %v501, 7
        %v503 = vsub.s32 4, %v502
        %v504 = vrot.slane %v438, %v503
        %v505 = vlaneseq
        %v506 = vshrl.u32 %v505, 7
        %v507 = vsub.s32 5, %v506
        %v508 = vrot.slane %v438, %v507
        %v509 = vlaneseq
        %v510 = vshrl.u32 %v509, 7
        %v511 = vsub.s32 6, %v510
        %v512 = vrot.slane %v438, %v511
        %v513 = vlaneseq
        %v514 = vshrl.u32 %v513, 7
        %v515 = vsub.s32 7, %v514
        %v516 = vrot.slane %v438, %v515
        %v517 = vlaneseq
        %v518 = vshrl.u32 %v517, 7
        %v519 = vsub.s32 0, %v518
        %v520 = vrot.slane %v440, %v519
        %v521 = vlaneseq
        %v522 = vshrl.u32 %v521, 7
        %v523 = vsub.s32 1, %v522
        %v524 = vrot.slane %v440, %v523
        %v525 = vlaneseq
        %v526 = vshrl.u32 %v525, 7
        %v527 = vsub.s32 2, %v526
        %v528 = vrot.slane %v440, %v527
        %v529 = vlaneseq
        %v530 = vshrl.u32 %v529, 7
        %v531 = vsub.s32 3, %v530
        %v532 = vrot.slane %v440, %v531
        %v533 = vlaneseq
        %v534 = vshrl.u32 %v533, 7
        %v535 = vsub.s32 4, %v534
        %v536 = vrot.slane %v440, %v535
        %v537 = vlaneseq
        %v538 = vshrl.u32 %v537, 7
        %v539 = vsub.s32 5, %v538
        %v540 = vrot.slane %v440, %v539
        %v541 = vlaneseq
        %v542 = vshrl.u32 %v541, 7
        %v543 = vsub.s32 6, %v542
        %v544 = vrot.slane %v440, %v543
        %v545 = vlaneseq
        %v546 = vshrl.u32 %v545, 7
        %v547 = vsub.s32 7, %v546
        %v548 = vrot.slane %v440, %v547
        %v549 = vlaneseq
        %v550 = vshrl.u32 %v549, 7
        %v551 = vsub.s32 0, %v550
        %v552 = vrot.slane %v442, %v551
        %v553 = vlaneseq
        %v554 = vshrl.u32 %v553, 7
        %v555 = vsub.s32 1, %v554
        %v556 = vrot.slane %v442, %v555
        %v557 = vlaneseq
        %v558 = vshrl.u32 %v557, 7
        %v559 = vsub.s32 2, %v558
        %v560 = vrot.slane %v442, %v559
        %v561 = vlaneseq
        %v562 = vshrl.u32 %v561, 7
        %v563 = vsub.s32 3, %v562
        %v564 = vrot.slane %v442, %v563
        %v565 = vlaneseq
        %v566 = vshrl.u32 %v565, 7
        %v567 = vsub.s32 4, %v566
        %v568 = vrot.slane %v442, %v567
        %v569 = vlaneseq
        %v570 = vshrl.u32 %v569, 7
        %v571 = vsub.s32 5, %v570
        %v572 = vrot.slane %v442, %v571
        %v573 = vlaneseq
        %v574 = vshrl.u32 %v573, 7
        %v575 = vsub.s32 6, %v574
        %v576 = vrot.slane %v442, %v575
        %v577 = vlaneseq
        %v578 = vshrl.u32 %v577, 7
        %v579 = vsub.s32 7, %v578
        %v580 = vrot.slane %v442, %v579
        %v581 = vlaneseq
        %v582 = vshrl.u32 %v581, 7
        %v583 = vsub.s32 0, %v582
        %v584 = vrot.slane %v444, %v583
        %v585 = vlaneseq
        %v586 = vshrl.u32 %v585, 7
        %v587 = vsub.s32 1, %v586
        %v588 = vrot.slane %v444, %v587
        %v589 = vlaneseq
        %v590 = vshrl.u32 %v589, 7
        %v591 = vsub.s32 2, %v590
        %v592 = vrot.slane %v444, %v591
        %v593 = vlaneseq
        %v594 = vshrl.u32 %v593, 7
        %v595 = vsub.s32 3, %v594
        %v596 = vrot.slane %v444, %v595
        %v597 = vlaneseq
        %v598 = vshrl.u32 %v597, 7
        %v599 = vsub.s32 4, %v598
        %v600 = vrot.slane %v444, %v599
        %v601 = vlaneseq
        %v602 = vshrl.u32 %v601, 7
        %v603 = vsub.s32 5, %v602
        %v604 = vrot.slane %v444, %v603
        %v605 = vlaneseq
        %v606 = vshrl.u32 %v605, 7
        %v607 = vsub.s32 6, %v606
        %v608 = vrot.slane %v444, %v607
        %v609 = vlaneseq
        %v610 = vshrl.u32 %v609, 7
        %v611 = vsub.s32 7, %v610
        %v612 = vrot.slane %v444, %v611
        %v613 = vlaneseq
        %v614 = vshrl.u32 %v613, 7
        %v615 = vsub.s32 0, %v614
        %v616 = vrot.slane %v446, %v615
        %v617 = vlaneseq
        %v618 = vshrl.u32 %v617, 7
        %v619 = vsub.s32 1, %v618
        %v620 = vrot.slane %v446, %v619
        %v621 = vlaneseq
        %v622 = vshrl.u32 %v621, 7
        %v623 = vsub.s32 2, %v622
        %v624 = vrot.slane %v446, %v623
        %v625 = vlaneseq
        %v626 = vshrl.u32 %v625, 7
        %v627 = vsub.s32 3, %v626
        %v628 = vrot.slane %v446, %v627
        %v629 = vlaneseq
        %v630 = vshrl.u32 %v629, 7
        %v631 = vsub.s32 4, %v630
        %v632 = vrot.slane %v446, %v631
        %v633 = vlaneseq
        %v634 = vshrl.u32 %v633, 7
        %v635 = vsub.s32 5, %v634
        %v636 = vrot.slane %v446, %v635
        %v637 = vlaneseq
        %v638 = vshrl.u32 %v637, 7
        %v639 = vsub.s32 6, %v638
        %v640 = vrot.slane %v446, %v639
        %v641 = vlaneseq
        %v642 = vshrl.u32 %v641, 7
        %v643 = vsub.s32 7, %v642
        %v644 = vrot.slane %v446, %v643
        %v645 = vlaneseq
        %v646 = vshrl.u32 %v645, 7
        %v647 = vsub.s32 0, %v646
        %v648 = vrot.slane %v448, %v647
        %v649 = vlaneseq
        %v650 = vshrl.u32 %v649, 7
        %v651 = vsub.s32 1, %v650
        %v652 = vrot.slane %v448, %v651
        %v653 = vlaneseq
        %v654 = vshrl.u32 %v653, 7
        %v655 = vsub.s32 2, %v654
        %v656 = vrot.slane %v448, %v655
        %v657 = vlaneseq
        %v658 = vshrl.u32 %v657, 7
        %v659 = vsub.s32 3, %v658
        %v660 = vrot.slane %v448, %v659
        %v661 = vlaneseq
        %v662 = vshrl.u32 %v661, 7
        %v663 = vsub.s32 4, %v662
        %v664 = vrot.slane %v448, %v663
        %v665 = vlaneseq
        %v666 = vshrl.u32 %v665, 7
        %v667 = vsub.s32 5, %v666
        %v668 = vrot.slane %v448, %v667
        %v669 = vlaneseq
        %v670 = vshrl.u32 %v669, 7
        %v671 = vsub.s32 6, %v670
        %v672 = vrot.slane %v448, %v671
        %v673 = vlaneseq
        %v674 = vshrl.u32 %v673, 7
        %v675 = vsub.s32 7, %v674
        %v676 = vrot.slane %v448, %v675
        %v677 = vlaneseq
        %v678 = vshrl.u32 %v677, 7
        %v679 = vsub.s32 0, %v678
        %v680 = vrot.slane %v450, %v679
        %v681 = vlaneseq
        %v682 = vshrl.u32 %v681, 7
        %v683 = vsub.s32 1, %v682
        %v684 = vrot.slane %v450, %v683
        %v685 = vlaneseq
        %v686 = vshrl.u32 %v685, 7
        %v687 = vsub.s32 2, %v686
        %v688 = vrot.slane %v450, %v687
        %v689 = vlaneseq
        %v690 = vshrl.u32 %v689, 7
        %v691 = vsub.s32 3, %v690
        %v692 = vrot.slane %v450, %v691
        %v693 = vlaneseq
        %v694 = vshrl.u32 %v693, 7
        %v695 = vsub.s32 4, %v694
        %v696 = vrot.slane %v450, %v695
        %v697 = vlaneseq
        %v698 = vshrl.u32 %v697, 7
        %v699 = vsub.s32 5, %v698
        %v700 = vrot.slane %v450, %v699
        %v701 = vlaneseq
        %v702 = vshrl.u32 %v701, 7
        %v703 = vsub.s32 6, %v702
        %v704 = vrot.slane %v450, %v703
        %v705 = vlaneseq
        %v706 = vshrl.u32 %v705, 7
        %v707 = vsub.s32 7, %v706
        %v708 = vrot.slane %v450, %v707
        %v709 = vlaneseq
        %v710 = vshrl.u32 %v709, 7
        %v711 = vsub.s32 0, %v710
        %v712 = vrot.slane %v452, %v711
        %v713 = vlaneseq
        %v714 = vshrl.u32 %v713, 7
        %v715 = vsub.s32 1, %v714
        %v716 = vrot.slane %v452, %v715
        %v717 = vlaneseq
        %v718 = vshrl.u32 %v717, 7
        %v719 = vsub.s32 2, %v718
        %v720 = vrot.slane %v452, %v719
        %v721 = vlaneseq
        %v722 = vshrl.u32 %v721, 7
        %v723 = vsub.s32 3, %v722
        %v724 = vrot.slane %v452, %v723
        %v725 = vlaneseq
        %v726 = vshrl.u32 %v725, 7
        %v727 = vsub.s32 4, %v726
        %v728 = vrot.slane %v452, %v727
        %v729 = vlaneseq
        %v730 = vshrl.u32 %v729, 7
        %v731 = vsub.s32 5, %v730
        %v732 = vrot.slane %v452, %v731
        %v733 = vlaneseq
        %v734 = vshrl.u32 %v733, 7
        %v735 = vsub.s32 6, %v734
        %v736 = vrot.slane %v452, %v735
        %v737 = vlaneseq
        %v738 = vshrl.u32 %v737, 7
        %v739 = vsub.s32 7, %v738
        %v740 = vrot.slane %v452, %v739
        %v741 = vlaneseq
        %v742 = vshrl.u32 %v741, 7
        %v743 = vsub.s32 0, %v742
        %v744 = vrot.slane %v454, %v743
        %v745 = vlaneseq
        %v746 = vshrl.u32 %v745, 7
        %v747 = vsub.s32 1, %v746
        %v748 = vrot.slane %v454, %v747
        %v749 = vlaneseq
        %v750 = vshrl.u32 %v749, 7
        %v751 = vsub.s32 2, %v750
        %v752 = vrot.slane %v454, %v751
        %v753 = vlaneseq
        %v754 = vshrl.u32 %v753, 7
        %v755 = vsub.s32 3, %v754
        %v756 = vrot.slane %v454, %v755
        %v757 = vlaneseq
        %v758 = vshrl.u32 %v757, 7
        %v759 = vsub.s32 4, %v758
        %v760 = vrot.slane %v454, %v759
        %v761 = vlaneseq
        %v762 = vshrl.u32 %v761, 7
        %v763 = vsub.s32 5, %v762
        %v764 = vrot.slane %v454, %v763
        %v765 = vlaneseq
        %v766 = vshrl.u32 %v765, 7
        %v767 = vsub.s32 6, %v766
        %v768 = vrot.slane %v454, %v767
        %v769 = vlaneseq
        %v770 = vshrl.u32 %v769, 7
        %v771 = vsub.s32 7, %v770
        %v772 = vrot.slane %v454, %v771
        %v773 = vlaneseq
        %v774 = vshrl.u32 %v773, 7
        %v775 = vsub.s32 0, %v774
        %v776 = vrot.slane %v456, %v775
        %v777 = vlaneseq
        %v778 = vshrl.u32 %v777, 7
        %v779 = vsub.s32 1, %v778
        %v780 = vrot.slane %v456, %v779
        %v781 = vlaneseq
        %v782 = vshrl.u32 %v781, 7
        %v783 = vsub.s32 2, %v782
        %v784 = vrot.slane %v456, %v783
        %v785 = vlaneseq
        %v786 = vshrl.u32 %v785, 7
        %v787 = vsub.s32 3, %v786
        %v788 = vrot.slane %v456, %v787
        %v789 = vlaneseq
        %v790 = vshrl.u32 %v789, 7
        %v791 = vsub.s32 4, %v790
        %v792 = vrot.slane %v456, %v791
        %v793 = vlaneseq
        %v794 = vshrl.u32 %v793, 7
        %v795 = vsub.s32 5, %v794
        %v796 = vrot.slane %v456, %v795
        %v797 = vlaneseq
        %v798 = vshrl.u32 %v797, 7
        %v799 = vsub.s32 6, %v798
        %v800 = vrot.slane %v456, %v799
        %v801 = vlaneseq
        %v802 = vshrl.u32 %v801, 7
        %v803 = vsub.s32 7, %v802
        %v804 = vrot.slane %v456, %v803
        %v805 = vlaneseq
        %v806 = vshrl.u32 %v805, 7
        %v807 = vsub.s32 0, %v806
        %v808 = vrot.slane %v458, %v807
        %v809 = vlaneseq
        %v810 = vshrl.u32 %v809, 7
        %v811 = vsub.s32 1, %v810
        %v812 = vrot.slane %v458, %v811
        %v813 = vlaneseq
        %v814 = vshrl.u32 %v813, 7
        %v815 = vsub.s32 2, %v814
        %v816 = vrot.slane %v458, %v815
        %v817 = vlaneseq
        %v818 = vshrl.u32 %v817, 7
        %v819 = vsub.s32 3, %v818
        %v820 = vrot.slane %v458, %v819
        %v821 = vlaneseq
        %v822 = vshrl.u32 %v821, 7
        %v823 = vsub.s32 4, %v822
        %v824 = vrot.slane %v458, %v823
        %v825 = vlaneseq
        %v826 = vshrl.u32 %v825, 7
        %v827 = vsub.s32 5, %v826
        %v828 = vrot.slane %v458, %v827
        %v829 = vlaneseq
        %v830 = vshrl.u32 %v829, 7
        %v831 = vsub.s32 6, %v830
        %v832 = vrot.slane %v458, %v831
        %v833 = vlaneseq
        %v834 = vshrl.u32 %v833, 7
        %v835 = vsub.s32 7, %v834
        %v836 = vrot.slane %v458, %v835
        %v837 = vlaneseq
        %v838 = vshrl.u32 %v837, 7
        %v839 = vsub.s32 0, %v838
        %v840 = vrot.slane %v460, %v839
        %v841 = vlaneseq
        %v842 = vshrl.u32 %v841, 7
        %v843 = vsub.s32 1, %v842
        %v844 = vrot.slane %v460, %v843
        %v845 = vlaneseq
        %v846 = vshrl.u32 %v845, 7
        %v847 = vsub.s32 2, %v846
        %v848 = vrot.slane %v460, %v847
        %v849 = vlaneseq
        %v850 = vshrl.u32 %v849, 7
        %v851 = vsub.s32 3, %v850
        %v852 = vrot.slane %v460, %v851
        %v853 = vlaneseq
        %v854 = vshrl.u32 %v853, 7
        %v855 = vsub.s32 4, %v854
        %v856 = vrot.slane %v460, %v855
        %v857 = vlaneseq
        %v858 = vshrl.u32 %v857, 7
        %v859 = vsub.s32 5, %v858
        %v860 = vrot.slane %v460, %v859
        %v861 = vlaneseq
        %v862 = vshrl.u32 %v861, 7
        %v863 = vsub.s32 6, %v862
        %v864 = vrot.slane %v460, %v863
        %v865 = vlaneseq
        %v866 = vshrl.u32 %v865, 7
        %v867 = vsub.s32 7, %v866
        %v868 = vrot.slane %v460, %v867
        %v869 = vlaneseq
        %v870 = vshrl.u32 %v869, 7
        %v871 = vsub.s32 0, %v870
        %v872 = vrot.slane %v462, %v871
        %v873 = vlaneseq
        %v874 = vshrl.u32 %v873, 7
        %v875 = vsub.s32 1, %v874
        %v876 = vrot.slane %v462, %v875
        %v877 = vlaneseq
        %v878 = vshrl.u32 %v877, 7
        %v879 = vsub.s32 2, %v878
        %v880 = vrot.slane %v462, %v879
        %v881 = vlaneseq
        %v882 = vshrl.u32 %v881, 7
        %v883 = vsub.s32 3, %v882
        %v884 = vrot.slane %v462, %v883
        %v885 = vlaneseq
        %v886 = vshrl.u32 %v885, 7
        %v887 = vsub.s32 4, %v886
        %v888 = vrot.slane %v462, %v887
        %v889 = vlaneseq
        %v890 = vshrl.u32 %v889, 7
        %v891 = vsub.s32 5, %v890
        %v892 = vrot.slane %v462, %v891
        %v893 = vlaneseq
        %v894 = vshrl.u32 %v893, 7
        %v895 = vsub.s32 6, %v894
        %v896 = vrot.slane %v462, %v895
        %v897 = vlaneseq
        %v898 = vshrl.u32 %v897, 7
        %v899 = vsub.s32 7, %v898
        %v900 = vrot.slane %v462, %v899
        %v901 = vlaneseq
        %v902 = vshrl.u32 %v901, 7
        %v903 = vsub.s32 0, %v902
        %v904 = vrot.slane %v464, %v903
        %v905 = vlaneseq
        %v906 = vshrl.u32 %v905, 7
        %v907 = vsub.s32 1, %v906
        %v908 = vrot.slane %v464, %v907
        %v909 = vlaneseq
        %v910 = vshrl.u32 %v909, 7
        %v911 = vsub.s32 2, %v910
        %v912 = vrot.slane %v464, %v911
        %v913 = vlaneseq
        %v914 = vshrl.u32 %v913, 7
        %v915 = vsub.s32 3, %v914
        %v916 = vrot.slane %v464, %v915
        %v917 = vlaneseq
        %v918 = vshrl.u32 %v917, 7
        %v919 = vsub.s32 4, %v918
        %v920 = vrot.slane %v464, %v919
        %v921 = vlaneseq
        %v922 = vshrl.u32 %v921, 7
        %v923 = vsub.s32 5, %v922
        %v924 = vrot.slane %v464, %v923
        %v925 = vlaneseq
        %v926 = vshrl.u32 %v925, 7
        %v927 = vsub.s32 6, %v926
        %v928 = vrot.slane %v464, %v927
        %v929 = vlaneseq
        %v930 = vshrl.u32 %v929, 7
        %v931 = vsub.s32 7, %v930
        %v932 = vrot.slane %v464, %v931
        %v933 = vlaneseq
        %v934 = vshrl.u32 %v933, 7
        %v935 = vsub.s32 0, %v934
        %v936 = vrot.slane %v466, %v935
        %v937 = vlaneseq
        %v938 = vshrl.u32 %v937, 7
        %v939 = vsub.s32 1, %v938
        %v940 = vrot.slane %v466, %v939
        %v941 = vlaneseq
        %v942 = vshrl.u32 %v941, 7
        %v943 = vsub.s32 2, %v942
        %v944 = vrot.slane %v466, %v943
        %v945 = vlaneseq
        %v946 = vshrl.u32 %v945, 7
        %v947 = vsub.s32 3, %v946
        %v948 = vrot.slane %v466, %v947
        %v949 = vlaneseq
        %v950 = vshrl.u32 %v949, 7
        %v951 = vsub.s32 4, %v950
        %v952 = vrot.slane %v466, %v951
        %v953 = vlaneseq
        %v954 = vshrl.u32 %v953, 7
        %v955 = vsub.s32 5, %v954
        %v956 = vrot.slane %v466, %v955
        %v957 = vlaneseq
        %v958 = vshrl.u32 %v957, 7
        %v959 = vsub.s32 6, %v958
        %v960 = vrot.slane %v466, %v959
        %v961 = vlaneseq
        %v962 = vshrl.u32 %v961, 7
        %v963 = vsub.s32 7, %v962
        %v964 = vrot.slane %v466, %v963
        %v965 = vlaneseq
        %v966 = vshrl.u32 %v965, 7
        %v967 = vsub.s32 0, %v966
        %v968 = vrot.slane %v468, %v967
        %v969 = vlaneseq
        %v970 = vshrl.u32 %v969, 7
        %v971 = vsub.s32 1, %v970
        %v972 = vrot.slane %v468, %v971
        %v973 = vlaneseq
        %v974 = vshrl.u32 %v973, 7
        %v975 = vsub.s32 2, %v974
        %v976 = vrot.slane %v468, %v975
        %v977 = vlaneseq
        %v978 = vshrl.u32 %v977, 7
        %v979 = vsub.s32 3, %v978
        %v980 = vrot.slane %v468, %v979
        %v981 = vlaneseq
        %v982 = vshrl.u32 %v981, 7
        %v983 = vsub.s32 4, %v982
        %v984 = vrot.slane %v468, %v983
        %v985 = vlaneseq
        %v986 = vshrl.u32 %v985, 7
        %v987 = vsub.s32 5, %v986
        %v988 = vrot.slane %v468, %v987
        %v989 = vlaneseq
        %v990 = vshrl.u32 %v989, 7
        %v991 = vsub.s32 6, %v990
        %v992 = vrot.slane %v468, %v991
        %v993 = vlaneseq
        %v994 = vshrl.u32 %v993, 7
        %v995 = vsub.s32 7, %v994
        %v996 = vrot.slane %v468, %v995
        %v997 = vcombine.low %v488, %v492
        %v998 = vcombine.low %v496, %v500
        %v999 = vcombine.low %v504, %v508
        %v1000 = vcombine.low %v512, %v516
        %v1002 = vunpack.c.l.s4 1966171168
        %v1003 = vunpack.c.0.s8 %v1002
        %v1004 = vlaneseq
        %v1005 = vshrl.u32 %v1004, 7
        %v1006 = vsub.s32 %v1003, %v1005
        %v1007 = vrot.slane %v997, %v1006
        %v1009 = vunpack.c.l.s4 1966171168
        %v1010 = vunpack.c.0.s8 %v1009
        %v1011 = vlaneseq
        %v1012 = vshrl.u32 %v1011, 7
        %v1013 = vsub.s32 %v1010, %v1012
        %v1014 = vrot.slane %v998, %v1013
        %v1016 = vunpack.c.l.s4 1966171168
        %v1017 = vunpack.c.0.s8 %v1016
        %v1018 = vlaneseq
        %v1019 = vshrl.u32 %v1018, 7
        %v1020 = vsub.s32 %v1017, %v1019
        %v1021 = vrot.slane %v999, %v1020
        %v1023 = vunpack.c.l.s4 1966171168
        %v1024 = vunpack.c.0.s8 %v1023
        %v1025 = vlaneseq
        %v1026 = vshrl.u32 %v1025, 7
        %v1027 = vsub.s32 %v1024, %v1026
        %v1028 = vrot.slane %v1000, %v1027
        %v1029 = vcombine.low %v1007, %v1014
        %v1030 = vcombine.low %v1021, %v1028
        %v1032 = vunpack.c.l.s4 1966171168
        %v1033 = vunpack.c.0.s8 %v1032
        %v1034 = vlaneseq
        %v1035 = vshrl.u32 %v1034, 7
        %v1036 = vsub.s32 %v1033, %v1035
        %v1037 = vrot.slane %v1029, %v1036
        %v1039 = vunpack.c.l.s4 1966171168
        %v1040 = vunpack.c.0.s8 %v1039
        %v1041 = vlaneseq
        %v1042 = vshrl.u32 %v1041, 7
        %v1043 = vsub.s32 %v1040, %v1042
        %v1044 = vrot.slane %v1030, %v1043
        %v1045 = vcombine.low %v1037, %v1044
        %v1046 = vcombine.low %v520, %v524
        %v1047 = vcombine.low %v528, %v532
        %v1048 = vcombine.low %v536, %v540
        %v1049 = vcombine.low %v544, %v548
        %v1051 = vunpack.c.l.s4 1966171168
        %v1052 = vunpack.c.0.s8 %v1051
        %v1053 = vlaneseq
        %v1054 = vshrl.u32 %v1053, 7
        %v1055 = vsub.s32 %v1052, %v1054
        %v1056 = vrot.slane %v1046, %v1055
        %v1058 = vunpack.c.l.s4 1966171168
        %v1059 = vunpack.c.0.s8 %v1058
        %v1060 = vlaneseq
        %v1061 = vshrl.u32 %v1060, 7
        %v1062 = vsub.s32 %v1059, %v1061
        %v1063 = vrot.slane %v1047, %v1062
        %v1065 = vunpack.c.l.s4 1966171168
        %v1066 = vunpack.c.0.s8 %v1065
        %v1067 = vlaneseq
        %v1068 = vshrl.u32 %v1067, 7
        %v1069 = vsub.s32 %v1066, %v1068
        %v1070 = vrot.slane %v1048, %v1069
        %v1072 = vunpack.c.l.s4 1966171168
        %v1073 = vunpack.c.0.s8 %v1072
        %v1074 = vlaneseq
        %v1075 = vshrl.u32 %v1074, 7
        %v1076 = vsub.s32 %v1073, %v1075
        %v1077 = vrot.slane %v1049, %v1076
        %v1078 = vcombine.low %v1056, %v1063
        %v1079 = vcombine.low %v1070, %v1077
        %v1081 = vunpack.c.l.s4 1966171168
        %v1082 = vunpack.c.0.s8 %v1081
        %v1083 = vlaneseq
        %v1084 = vshrl.u32 %v1083, 7
        %v1085 = vsub.s32 %v1082, %v1084
        %v1086 = vrot.slane %v1078, %v1085
        %v1088 = vunpack.c.l.s4 1966171168
        %v1089 = vunpack.c.0.s8 %v1088
        %v1090 = vlaneseq
        %v1091 = vshrl.u32 %v1090, 7
        %v1092 = vsub.s32 %v1089, %v1091
        %v1093 = vrot.slane %v1079, %v1092
        %v1094 = vcombine.low %v1086, %v1093
        %v1095 = vcombine.low %v552, %v556
        %v1096 = vcombine.low %v560, %v564
        %v1097 = vcombine.low %v568, %v572
        %v1098 = vcombine.low %v576, %v580
        %v1100 = vunpack.c.l.s4 1966171168
        %v1101 = vunpack.c.0.s8 %v1100
        %v1102 = vlaneseq
        %v1103 = vshrl.u32 %v1102, 7
        %v1104 = vsub.s32 %v1101, %v1103
        %v1105 = vrot.slane %v1095, %v1104
        %v1107 = vunpack.c.l.s4 1966171168
        %v1108 = vunpack.c.0.s8 %v1107
        %v1109 = vlaneseq
        %v1110 = vshrl.u32 %v1109, 7
        %v1111 = vsub.s32 %v1108, %v1110
        %v1112 = vrot.slane %v1096, %v1111
        %v1114 = vunpack.c.l.s4 1966171168
        %v1115 = vunpack.c.0.s8 %v1114
        %v1116 = vlaneseq
        %v1117 = vshrl.u32 %v1116, 7
        %v1118 = vsub.s32 %v1115, %v1117
        %v1119 = vrot.slane %v1097, %v1118
        %v1121 = vunpack.c.l.s4 1966171168
        %v1122 = vunpack.c.0.s8 %v1121
        %v1123 = vlaneseq
        %v1124 = vshrl.u32 %v1123, 7
        %v1125 = vsub.s32 %v1122, %v1124
        %v1126 = vrot.slane %v1098, %v1125
        %v1127 = vcombine.low %v1105, %v1112
        %v1128 = vcombine.low %v1119, %v1126
        %v1130 = vunpack.c.l.s4 1966171168
        %v1131 = vunpack.c.0.s8 %v1130
        %v1132 = vlaneseq
        %v1133 = vshrl.u32 %v1132, 7
        %v1134 = vsub.s32 %v1131, %v1133
        %v1135 = vrot.slane %v1127, %v1134
        %v1137 = vunpack.c.l.s4 1966171168
        %v1138 = vunpack.c.0.s8 %v1137
        %v1139 = vlaneseq
        %v1140 = vshrl.u32 %v1139, 7
        %v1141 = vsub.s32 %v1138, %v1140
        %v1142 = vrot.slane %v1128, %v1141
        %v1143 = vcombine.low %v1135, %v1142
        %v1144 = vcombine.low %v584, %v588
        %v1145 = vcombine.low %v592, %v596
        %v1146 = vcombine.low %v600, %v604
        %v1147 = vcombine.low %v608, %v612
        %v1149 = vunpack.c.l.s4 1966171168
        %v1150 = vunpack.c.0.s8 %v1149
        %v1151 = vlaneseq
        %v1152 = vshrl.u32 %v1151, 7
        %v1153 = vsub.s32 %v1150, %v1152
        %v1154 = vrot.slane %v1144, %v1153
        %v1156 = vunpack.c.l.s4 1966171168
        %v1157 = vunpack.c.0.s8 %v1156
        %v1158 = vlaneseq
        %v1159 = vshrl.u32 %v1158, 7
        %v1160 = vsub.s32 %v1157, %v1159
        %v1161 = vrot.slane %v1145, %v1160
        %v1163 = vunpack.c.l.s4 1966171168
        %v1164 = vunpack.c.0.s8 %v1163
        %v1165 = vlaneseq
        %v1166 = vshrl.u32 %v1165, 7
        %v1167 = vsub.s32 %v1164, %v1166
        %v1168 = vrot.slane %v1146, %v1167
        %v1170 = vunpack.c.l.s4 1966171168
        %v1171 = vunpack.c.0.s8 %v1170
        %v1172 = vlaneseq
        %v1173 = vshrl.u32 %v1172, 7
        %v1174 = vsub.s32 %v1171, %v1173
        %v1175 = vrot.slane %v1147, %v1174
        %v1176 = vcombine.low %v1154, %v1161
        %v1177 = vcombine.low %v1168, %v1175
        %v1179 = vunpack.c.l.s4 1966171168
        %v1180 = vunpack.c.0.s8 %v1179
        %v1181 = vlaneseq
        %v1182 = vshrl.u32 %v1181, 7
        %v1183 = vsub.s32 %v1180, %v1182
        %v1184 = vrot.slane %v1176, %v1183
        %v1186 = vunpack.c.l.s4 1966171168
        %v1187 = vunpack.c.0.s8 %v1186
        %v1188 = vlaneseq
        %v1189 = vshrl.u32 %v1188, 7
        %v1190 = vsub.s32 %v1187, %v1189
        %v1191 = vrot.slane %v1177, %v1190
        %v1192 = vcombine.low %v1184, %v1191
        %v1193 = vcombine.low %v616, %v620
        %v1194 = vcombine.low %v624, %v628
        %v1195 = vcombine.low %v632, %v636
        %v1196 = vcombine.low %v640, %v644
        %v1198 = vunpack.c.l.s4 1966171168
        %v1199 = vunpack.c.0.s8 %v1198
        %v1200 = vlaneseq
        %v1201 = vshrl.u32 %v1200, 7
        %v1202 = vsub.s32 %v1199, %v1201
        %v1203 = vrot.slane %v1193, %v1202
        %v1205 = vunpack.c.l.s4 1966171168
        %v1206 = vunpack.c.0.s8 %v1205
        %v1207 = vlaneseq
        %v1208 = vshrl.u32 %v1207, 7
        %v1209 = vsub.s32 %v1206, %v1208
        %v1210 = vrot.slane %v1194, %v1209
        %v1212 = vunpack.c.l.s4 1966171168
        %v1213 = vunpack.c.0.s8 %v1212
        %v1214 = vlaneseq
        %v1215 = vshrl.u32 %v1214, 7
        %v1216 = vsub.s32 %v1213, %v1215
        %v1217 = vrot.slane %v1195, %v1216
        %v1219 = vunpack.c.l.s4 1966171168
        %v1220 = vunpack.c.0.s8 %v1219
        %v1221 = vlaneseq
        %v1222 = vshrl.u32 %v1221, 7
        %v1223 = vsub.s32 %v1220, %v1222
        %v1224 = vrot.slane %v1196, %v1223
        %v1225 = vcombine.low %v1203, %v1210
        %v1226 = vcombine.low %v1217, %v1224
        %v1228 = vunpack.c.l.s4 1966171168
        %v1229 = vunpack.c.0.s8 %v1228
        %v1230 = vlaneseq
        %v1231 = vshrl.u32 %v1230, 7
        %v1232 = vsub.s32 %v1229, %v1231
        %v1233 = vrot.slane %v1225, %v1232
        %v1235 = vunpack.c.l.s4 1966171168
        %v1236 = vunpack.c.0.s8 %v1235
        %v1237 = vlaneseq
        %v1238 = vshrl.u32 %v1237, 7
        %v1239 = vsub.s32 %v1236, %v1238
        %v1240 = vrot.slane %v1226, %v1239
        %v1241 = vcombine.low %v1233, %v1240
        %v1242 = vcombine.low %v648, %v652
        %v1243 = vcombine.low %v656, %v660
        %v1244 = vcombine.low %v664, %v668
        %v1245 = vcombine.low %v672, %v676
        %v1247 = vunpack.c.l.s4 1966171168
        %v1248 = vunpack.c.0.s8 %v1247
        %v1249 = vlaneseq
        %v1250 = vshrl.u32 %v1249, 7
        %v1251 = vsub.s32 %v1248, %v1250
        %v1252 = vrot.slane %v1242, %v1251
        %v1254 = vunpack.c.l.s4 1966171168
        %v1255 = vunpack.c.0.s8 %v1254
        %v1256 = vlaneseq
        %v1257 = vshrl.u32 %v1256, 7
        %v1258 = vsub.s32 %v1255, %v1257
        %v1259 = vrot.slane %v1243, %v1258
        %v1261 = vunpack.c.l.s4 1966171168
        %v1262 = vunpack.c.0.s8 %v1261
        %v1263 = vlaneseq
        %v1264 = vshrl.u32 %v1263, 7
        %v1265 = vsub.s32 %v1262, %v1264
        %v1266 = vrot.slane %v1244, %v1265
        %v1268 = vunpack.c.l.s4 1966171168
        %v1269 = vunpack.c.0.s8 %v1268
        %v1270 = vlaneseq
        %v1271 = vshrl.u32 %v1270, 7
        %v1272 = vsub.s32 %v1269, %v1271
        %v1273 = vrot.slane %v1245, %v1272
        %v1274 = vcombine.low %v1252, %v1259
        %v1275 = vcombine.low %v1266, %v1273
        %v1277 = vunpack.c.l.s4 1966171168
        %v1278 = vunpack.c.0.s8 %v1277
        %v1279 = vlaneseq
        %v1280 = vshrl.u32 %v1279, 7
        %v1281 = vsub.s32 %v1278, %v1280
        %v1282 = vrot.slane %v1274, %v1281
        %v1284 = vunpack.c.l.s4 1966171168
        %v1285 = vunpack.c.0.s8 %v1284
        %v1286 = vlaneseq
        %v1287 = vshrl.u32 %v1286, 7
        %v1288 = vsub.s32 %v1285, %v1287
        %v1289 = vrot.slane %v1275, %v1288
        %v1290 = vcombine.low %v1282, %v1289
        %v1291 = vcombine.low %v680, %v684
        %v1292 = vcombine.low %v688, %v692
        %v1293 = vcombine.low %v696, %v700
        %v1294 = vcombine.low %v704, %v708
        %v1296 = vunpack.c.l.s4 1966171168
        %v1297 = vunpack.c.0.s8 %v1296
        %v1298 = vlaneseq
        %v1299 = vshrl.u32 %v1298, 7
        %v1300 = vsub.s32 %v1297, %v1299
        %v1301 = vrot.slane %v1291, %v1300
        %v1303 = vunpack.c.l.s4 1966171168
        %v1304 = vunpack.c.0.s8 %v1303
        %v1305 = vlaneseq
        %v1306 = vshrl.u32 %v1305, 7
        %v1307 = vsub.s32 %v1304, %v1306
        %v1308 = vrot.slane %v1292, %v1307
        %v1310 = vunpack.c.l.s4 1966171168
        %v1311 = vunpack.c.0.s8 %v1310
        %v1312 = vlaneseq
        %v1313 = vshrl.u32 %v1312, 7
        %v1314 = vsub.s32 %v1311, %v1313
        %v1315 = vrot.slane %v1293, %v1314
        %v1317 = vunpack.c.l.s4 1966171168
        %v1318 = vunpack.c.0.s8 %v1317
        %v1319 = vlaneseq
        %v1320 = vshrl.u32 %v1319, 7
        %v1321 = vsub.s32 %v1318, %v1320
        %v1322 = vrot.slane %v1294, %v1321
        %v1323 = vcombine.low %v1301, %v1308
        %v1324 = vcombine.low %v1315, %v1322
        %v1326 = vunpack.c.l.s4 1966171168
        %v1327 = vunpack.c.0.s8 %v1326
        %v1328 = vlaneseq
        %v1329 = vshrl.u32 %v1328, 7
        %v1330 = vsub.s32 %v1327, %v1329
        %v1331 = vrot.slane %v1323, %v1330
        %v1333 = vunpack.c.l.s4 1966171168
        %v1334 = vunpack.c.0.s8 %v1333
        %v1335 = vlaneseq
        %v1336 = vshrl.u32 %v1335, 7
        %v1337 = vsub.s32 %v1334, %v1336
        %v1338 = vrot.slane %v1324, %v1337
        %v1339 = vcombine.low %v1331, %v1338
        %v1340 = vcombine.low %v712, %v716
        %v1341 = vcombine.low %v720, %v724
        %v1342 = vcombine.low %v728, %v732
        %v1343 = vcombine.low %v736, %v740
        %v1345 = vunpack.c.l.s4 1966171168
        %v1346 = vunpack.c.0.s8 %v1345
        %v1347 = vlaneseq
        %v1348 = vshrl.u32 %v1347, 7
        %v1349 = vsub.s32 %v1346, %v1348
        %v1350 = vrot.slane %v1340, %v1349
        %v1352 = vunpack.c.l.s4 1966171168
        %v1353 = vunpack.c.0.s8 %v1352
        %v1354 = vlaneseq
        %v1355 = vshrl.u32 %v1354, 7
        %v1356 = vsub.s32 %v1353, %v1355
        %v1357 = vrot.slane %v1341, %v1356
        %v1359 = vunpack.c.l.s4 1966171168
        %v1360 = vunpack.c.0.s8 %v1359
        %v1361 = vlaneseq
        %v1362 = vshrl.u32 %v1361, 7
        %v1363 = vsub.s32 %v1360, %v1362
        %v1364 = vrot.slane %v1342, %v1363
        %v1366 = vunpack.c.l.s4 1966171168
        %v1367 = vunpack.c.0.s8 %v1366
        %v1368 = vlaneseq
        %v1369 = vshrl.u32 %v1368, 7
        %v1370 = vsub.s32 %v1367, %v1369
        %v1371 = vrot.slane %v1343, %v1370
        %v1372 = vcombine.low %v1350, %v1357
        %v1373 = vcombine.low %v1364, %v1371
        %v1375 = vunpack.c.l.s4 1966171168
        %v1376 = vunpack.c.0.s8 %v1375
        %v1377 = vlaneseq
        %v1378 = vshrl.u32 %v1377, 7
        %v1379 = vsub.s32 %v1376, %v1378
        %v1380 = vrot.slane %v1372, %v1379
        %v1382 = vunpack.c.l.s4 1966171168
        %v1383 = vunpack.c.0.s8 %v1382
        %v1384 = vlaneseq
        %v1385 = vshrl.u32 %v1384, 7
        %v1386 = vsub.s32 %v1383, %v1385
        %v1387 = vrot.slane %v1373, %v1386
        %v1388 = vcombine.low %v1380, %v1387
        %v1389 = vcombine.low %v744, %v748
        %v1390 = vcombine.low %v752, %v756
        %v1391 = vcombine.low %v760, %v764
        %v1392 = vcombine.low %v768, %v772
        %v1394 = vunpack.c.l.s4 1966171168
        %v1395 = vunpack.c.0.s8 %v1394
        %v1396 = vlaneseq
        %v1397 = vshrl.u32 %v1396, 7
        %v1398 = vsub.s32 %v1395, %v1397
        %v1399 = vrot.slane %v1389, %v1398
        %v1401 = vunpack.c.l.s4 1966171168
        %v1402 = vunpack.c.0.s8 %v1401
        %v1403 = vlaneseq
        %v1404 = vshrl.u32 %v1403, 7
        %v1405 = vsub.s32 %v1402, %v1404
        %v1406 = vrot.slane %v1390, %v1405
        %v1408 = vunpack.c.l.s4 1966171168
        %v1409 = vunpack.c.0.s8 %v1408
        %v1410 = vlaneseq
        %v1411 = vshrl.u32 %v1410, 7
        %v1412 = vsub.s32 %v1409, %v1411
        %v1413 = vrot.slane %v1391, %v1412
        %v1415 = vunpack.c.l.s4 1966171168
        %v1416 = vunpack.c.0.s8 %v1415
        %v1417 = vlaneseq
        %v1418 = vshrl.u32 %v1417, 7
        %v1419 = vsub.s32 %v1416, %v1418
        %v1420 = vrot.slane %v1392, %v1419
        %v1421 = vcombine.low %v1399, %v1406
        %v1422 = vcombine.low %v1413, %v1420
        %v1424 = vunpack.c.l.s4 1966171168
        %v1425 = vunpack.c.0.s8 %v1424
        %v1426 = vlaneseq
        %v1427 = vshrl.u32 %v1426, 7
        %v1428 = vsub.s32 %v1425, %v1427
        %v1429 = vrot.slane %v1421, %v1428
        %v1431 = vunpack.c.l.s4 1966171168
        %v1432 = vunpack.c.0.s8 %v1431
        %v1433 = vlaneseq
        %v1434 = vshrl.u32 %v1433, 7
        %v1435 = vsub.s32 %v1432, %v1434
        %v1436 = vrot.slane %v1422, %v1435
        %v1437 = vcombine.low %v1429, %v1436
        %v1438 = vcombine.low %v776, %v780
        %v1439 = vcombine.low %v784, %v788
        %v1440 = vcombine.low %v792, %v796
        %v1441 = vcombine.low %v800, %v804
        %v1443 = vunpack.c.l.s4 1966171168
        %v1444 = vunpack.c.0.s8 %v1443
        %v1445 = vlaneseq
        %v1446 = vshrl.u32 %v1445, 7
        %v1447 = vsub.s32 %v1444, %v1446
        %v1448 = vrot.slane %v1438, %v1447
        %v1450 = vunpack.c.l.s4 1966171168
        %v1451 = vunpack.c.0.s8 %v1450
        %v1452 = vlaneseq
        %v1453 = vshrl.u32 %v1452, 7
        %v1454 = vsub.s32 %v1451, %v1453
        %v1455 = vrot.slane %v1439, %v1454
        %v1457 = vunpack.c.l.s4 1966171168
        %v1458 = vunpack.c.0.s8 %v1457
        %v1459 = vlaneseq
        %v1460 = vshrl.u32 %v1459, 7
        %v1461 = vsub.s32 %v1458, %v1460
        %v1462 = vrot.slane %v1440, %v1461
        %v1464 = vunpack.c.l.s4 1966171168
        %v1465 = vunpack.c.0.s8 %v1464
        %v1466 = vlaneseq
        %v1467 = vshrl.u32 %v1466, 7
        %v1468 = vsub.s32 %v1465, %v1467
        %v1469 = vrot.slane %v1441, %v1468
        %v1470 = vcombine.low %v1448, %v1455
        %v1471 = vcombine.low %v1462, %v1469
        %v1473 = vunpack.c.l.s4 1966171168
        %v1474 = vunpack.c.0.s8 %v1473
        %v1475 = vlaneseq
        %v1476 = vshrl.u32 %v1475, 7
        %v1477 = vsub.s32 %v1474, %v1476
        %v1478 = vrot.slane %v1470, %v1477
        %v1480 = vunpack.c.l.s4 1966171168
        %v1481 = vunpack.c.0.s8 %v1480
        %v1482 = vlaneseq
        %v1483 = vshrl.u32 %v1482, 7
        %v1484 = vsub.s32 %v1481, %v1483
        %v1485 = vrot.slane %v1471, %v1484
        %v1486 = vcombine.low %v1478, %v1485
        %v1487 = vcombine.low %v808, %v812
        %v1488 = vcombine.low %v816, %v820
        %v1489 = vcombine.low %v824, %v828
        %v1490 = vcombine.low %v832, %v836
        %v1492 = vunpack.c.l.s4 1966171168
        %v1493 = vunpack.c.0.s8 %v1492
        %v1494 = vlaneseq
        %v1495 = vshrl.u32 %v1494, 7
        %v1496 = vsub.s32 %v1493, %v1495
        %v1497 = vrot.slane %v1487, %v1496
        %v1499 = vunpack.c.l.s4 1966171168
        %v1500 = vunpack.c.0.s8 %v1499
        %v1501 = vlaneseq
        %v1502 = vshrl.u32 %v1501, 7
        %v1503 = vsub.s32 %v1500, %v1502
        %v1504 = vrot.slane %v1488, %v1503
        %v1506 = vunpack.c.l.s4 1966171168
        %v1507 = vunpack.c.0.s8 %v1506
        %v1508 = vlaneseq
        %v1509 = vshrl.u32 %v1508, 7
        %v1510 = vsub.s32 %v1507, %v1509
        %v1511 = vrot.slane %v1489, %v1510
        %v1513 = vunpack.c.l.s4 1966171168
        %v1514 = vunpack.c.0.s8 %v1513
        %v1515 = vlaneseq
        %v1516 = vshrl.u32 %v1515, 7
        %v1517 = vsub.s32 %v1514, %v1516
        %v1518 = vrot.slane %v1490, %v1517
        %v1519 = vcombine.low %v1497, %v1504
        %v1520 = vcombine.low %v1511, %v1518
        %v1522 = vunpack.c.l.s4 1966171168
        %v1523 = vunpack.c.0.s8 %v1522
        %v1524 = vlaneseq
        %v1525 = vshrl.u32 %v1524, 7
        %v1526 = vsub.s32 %v1523, %v1525
        %v1527 = vrot.slane %v1519, %v1526
        %v1529 = vunpack.c.l.s4 1966171168
        %v1530 = vunpack.c.0.s8 %v1529
        %v1531 = vlaneseq
        %v1532 = vshrl.u32 %v1531, 7
        %v1533 = vsub.s32 %v1530, %v1532
        %v1534 = vrot.slane %v1520, %v1533
        %v1535 = vcombine.low %v1527, %v1534
        %v1536 = vcombine.low %v840, %v844
        %v1537 = vcombine.low %v848, %v852
        %v1538 = vcombine.low %v856, %v860
        %v1539 = vcombine.low %v864, %v868
        %v1541 = vunpack.c.l.s4 1966171168
        %v1542 = vunpack.c.0.s8 %v1541
        %v1543 = vlaneseq
        %v1544 = vshrl.u32 %v1543, 7
        %v1545 = vsub.s32 %v1542, %v1544
        %v1546 = vrot.slane %v1536, %v1545
        %v1548 = vunpack.c.l.s4 1966171168
        %v1549 = vunpack.c.0.s8 %v1548
        %v1550 = vlaneseq
        %v1551 = vshrl.u32 %v1550, 7
        %v1552 = vsub.s32 %v1549, %v1551
        %v1553 = vrot.slane %v1537, %v1552
        %v1555 = vunpack.c.l.s4 1966171168
        %v1556 = vunpack.c.0.s8 %v1555
        %v1557 = vlaneseq
        %v1558 = vshrl.u32 %v1557, 7
        %v1559 = vsub.s32 %v1556, %v1558
        %v1560 = vrot.slane %v1538, %v1559
        %v1562 = vunpack.c.l.s4 1966171168
        %v1563 = vunpack.c.0.s8 %v1562
        %v1564 = vlaneseq
        %v1565 = vshrl.u32 %v1564, 7
        %v1566 = vsub.s32 %v1563, %v1565
        %v1567 = vrot.slane %v1539, %v1566
        %v1568 = vcombine.low %v1546, %v1553
        %v1569 = vcombine.low %v1560, %v1567
        %v1571 = vunpack.c.l.s4 1966171168
        %v1572 = vunpack.c.0.s8 %v1571
        %v1573 = vlaneseq
        %v1574 = vshrl.u32 %v1573, 7
        %v1575 = vsub.s32 %v1572, %v1574
        %v1576 = vrot.slane %v1568, %v1575
        %v1578 = vunpack.c.l.s4 1966171168
        %v1579 = vunpack.c.0.s8 %v1578
        %v1580 = vlaneseq
        %v1581 = vshrl.u32 %v1580, 7
        %v1582 = vsub.s32 %v1579, %v1581
        %v1583 = vrot.slane %v1569, %v1582
        %v1584 = vcombine.low %v1576, %v1583
        %v1585 = vcombine.low %v872, %v876
        %v1586 = vcombine.low %v880, %v884
        %v1587 = vcombine.low %v888, %v892
        %v1588 = vcombine.low %v896, %v900
        %v1590 = vunpack.c.l.s4 1966171168
        %v1591 = vunpack.c.0.s8 %v1590
        %v1592 = vlaneseq
        %v1593 = vshrl.u32 %v1592, 7
        %v1594 = vsub.s32 %v1591, %v1593
        %v1595 = vrot.slane %v1585, %v1594
        %v1597 = vunpack.c.l.s4 1966171168
        %v1598 = vunpack.c.0.s8 %v1597
        %v1599 = vlaneseq
        %v1600 = vshrl.u32 %v1599, 7
        %v1601 = vsub.s32 %v1598, %v1600
        %v1602 = vrot.slane %v1586, %v1601
        %v1604 = vunpack.c.l.s4 1966171168
        %v1605 = vunpack.c.0.s8 %v1604
        %v1606 = vlaneseq
        %v1607 = vshrl.u32 %v1606, 7
        %v1608 = vsub.s32 %v1605, %v1607
        %v1609 = vrot.slane %v1587, %v1608
        %v1611 = vunpack.c.l.s4 1966171168
        %v1612 = vunpack.c.0.s8 %v1611
        %v1613 = vlaneseq
        %v1614 = vshrl.u32 %v1613, 7
        %v1615 = vsub.s32 %v1612, %v1614
        %v1616 = vrot.slane %v1588, %v1615
        %v1617 = vcombine.low %v1595, %v1602
        %v1618 = vcombine.low %v1609, %v1616
        %v1620 = vunpack.c.l.s4 1966171168
        %v1621 = vunpack.c.0.s8 %v1620
        %v1622 = vlaneseq
        %v1623 = vshrl.u32 %v1622, 7
        %v1624 = vsub.s32 %v1621, %v1623
        %v1625 = vrot.slane %v1617, %v1624
        %v1627 = vunpack.c.l.s4 1966171168
        %v1628 = vunpack.c.0.s8 %v1627
        %v1629 = vlaneseq
        %v1630 = vshrl.u32 %v1629, 7
        %v1631 = vsub.s32 %v1628, %v1630
        %v1632 = vrot.slane %v1618, %v1631
        %v1633 = vcombine.low %v1625, %v1632
        %v1634 = vcombine.low %v904, %v908
        %v1635 = vcombine.low %v912, %v916
        %v1636 = vcombine.low %v920, %v924
        %v1637 = vcombine.low %v928, %v932
        %v1639 = vunpack.c.l.s4 1966171168
        %v1640 = vunpack.c.0.s8 %v1639
        %v1641 = vlaneseq
        %v1642 = vshrl.u32 %v1641, 7
        %v1643 = vsub.s32 %v1640, %v1642
        %v1644 = vrot.slane %v1634, %v1643
        %v1646 = vunpack.c.l.s4 1966171168
        %v1647 = vunpack.c.0.s8 %v1646
        %v1648 = vlaneseq
        %v1649 = vshrl.u32 %v1648, 7
        %v1650 = vsub.s32 %v1647, %v1649
        %v1651 = vrot.slane %v1635, %v1650
        %v1653 = vunpack.c.l.s4 1966171168
        %v1654 = vunpack.c.0.s8 %v1653
        %v1655 = vlaneseq
        %v1656 = vshrl.u32 %v1655, 7
        %v1657 = vsub.s32 %v1654, %v1656
        %v1658 = vrot.slane %v1636, %v1657
        %v1660 = vunpack.c.l.s4 1966171168
        %v1661 = vunpack.c.0.s8 %v1660
        %v1662 = vlaneseq
        %v1663 = vshrl.u32 %v1662, 7
        %v1664 = vsub.s32 %v1661, %v1663
        %v1665 = vrot.slane %v1637, %v1664
        %v1666 = vcombine.low %v1644, %v1651
        %v1667 = vcombine.low %v1658, %v1665
        %v1669 = vunpack.c.l.s4 1966171168
        %v1670 = vunpack.c.0.s8 %v1669
        %v1671 = vlaneseq
        %v1672 = vshrl.u32 %v1671, 7
        %v1673 = vsub.s32 %v1670, %v1672
        %v1674 = vrot.slane %v1666, %v1673
        %v1676 = vunpack.c.l.s4 1966171168
        %v1677 = vunpack.c.0.s8 %v1676
        %v1678 = vlaneseq
        %v1679 = vshrl.u32 %v1678, 7
        %v1680 = vsub.s32 %v1677, %v1679
        %v1681 = vrot.slane %v1667, %v1680
        %v1682 = vcombine.low %v1674, %v1681
        %v1683 = vcombine.low %v936, %v940
        %v1684 = vcombine.low %v944, %v948
        %v1685 = vcombine.low %v952, %v956
        %v1686 = vcombine.low %v960, %v964
        %v1688 = vunpack.c.l.s4 1966171168
        %v1689 = vunpack.c.0.s8 %v1688
        %v1690 = vlaneseq
        %v1691 = vshrl.u32 %v1690, 7
        %v1692 = vsub.s32 %v1689, %v1691
        %v1693 = vrot.slane %v1683, %v1692
        %v1695 = vunpack.c.l.s4 1966171168
        %v1696 = vunpack.c.0.s8 %v1695
        %v1697 = vlaneseq
        %v1698 = vshrl.u32 %v1697, 7
        %v1699 = vsub.s32 %v1696, %v1698
        %v1700 = vrot.slane %v1684, %v1699
        %v1702 = vunpack.c.l.s4 1966171168
        %v1703 = vunpack.c.0.s8 %v1702
        %v1704 = vlaneseq
        %v1705 = vshrl.u32 %v1704, 7
        %v1706 = vsub.s32 %v1703, %v1705
        %v1707 = vrot.slane %v1685, %v1706
        %v1709 = vunpack.c.l.s4 1966171168
        %v1710 = vunpack.c.0.s8 %v1709
        %v1711 = vlaneseq
        %v1712 = vshrl.u32 %v1711, 7
        %v1713 = vsub.s32 %v1710, %v1712
        %v1714 = vrot.slane %v1686, %v1713
        %v1715 = vcombine.low %v1693, %v1700
        %v1716 = vcombine.low %v1707, %v1714
        %v1718 = vunpack.c.l.s4 1966171168
        %v1719 = vunpack.c.0.s8 %v1718
        %v1720 = vlaneseq
        %v1721 = vshrl.u32 %v1720, 7
        %v1722 = vsub.s32 %v1719, %v1721
        %v1723 = vrot.slane %v1715, %v1722
        %v1725 = vunpack.c.l.s4 1966171168
        %v1726 = vunpack.c.0.s8 %v1725
        %v1727 = vlaneseq
        %v1728 = vshrl.u32 %v1727, 7
        %v1729 = vsub.s32 %v1726, %v1728
        %v1730 = vrot.slane %v1716, %v1729
        %v1731 = vcombine.low %v1723, %v1730
        %v1732 = vcombine.low %v968, %v972
        %v1733 = vcombine.low %v976, %v980
        %v1734 = vcombine.low %v984, %v988
        %v1735 = vcombine.low %v992, %v996
        %v1737 = vunpack.c.l.s4 1966171168
        %v1738 = vunpack.c.0.s8 %v1737
        %v1739 = vlaneseq
        %v1740 = vshrl.u32 %v1739, 7
        %v1741 = vsub.s32 %v1738, %v1740
        %v1742 = vrot.slane %v1732, %v1741
        %v1744 = vunpack.c.l.s4 1966171168
        %v1745 = vunpack.c.0.s8 %v1744
        %v1746 = vlaneseq
        %v1747 = vshrl.u32 %v1746, 7
        %v1748 = vsub.s32 %v1745, %v1747
        %v1749 = vrot.slane %v1733, %v1748
        %v1751 = vunpack.c.l.s4 1966171168
        %v1752 = vunpack.c.0.s8 %v1751
        %v1753 = vlaneseq
        %v1754 = vshrl.u32 %v1753, 7
        %v1755 = vsub.s32 %v1752, %v1754
        %v1756 = vrot.slane %v1734, %v1755
        %v1758 = vunpack.c.l.s4 1966171168
        %v1759 = vunpack.c.0.s8 %v1758
        %v1760 = vlaneseq
        %v1761 = vshrl.u32 %v1760, 7
        %v1762 = vsub.s32 %v1759, %v1761
        %v1763 = vrot.slane %v1735, %v1762
        %v1764 = vcombine.low %v1742, %v1749
        %v1765 = vcombine.low %v1756, %v1763
        %v1767 = vunpack.c.l.s4 1966171168
        %v1768 = vunpack.c.0.s8 %v1767
        %v1769 = vlaneseq
        %v1770 = vshrl.u32 %v1769, 7
        %v1771 = vsub.s32 %v1768, %v1770
        %v1772 = vrot.slane %v1764, %v1771
        %v1774 = vunpack.c.l.s4 1966171168
        %v1775 = vunpack.c.0.s8 %v1774
        %v1776 = vlaneseq
        %v1777 = vshrl.u32 %v1776, 7
        %v1778 = vsub.s32 %v1775, %v1777
        %v1779 = vrot.slane %v1765, %v1778
        %v1780 = vcombine.low %v1772, %v1779
        %1781 = vset.pattern.permute.xlu0 0
        %1782 = vperm.xlu0 %1781, %v1045
        %v1783 = vpop.permute.xlu0 %1782
        %1784 = vset.pattern.permute.xlu0 0
        %1785 = vperm.xlu0 %1784, %v1094
        %v1786 = vpop.permute.xlu0 %1785
        %1787 = vset.pattern.permute.xlu0 0
        %1788 = vperm.xlu0 %1787, %v1143
        %v1789 = vpop.permute.xlu0 %1788
        %1790 = vset.pattern.permute.xlu0 0
        %1791 = vperm.xlu0 %1790, %v1192
        %v1792 = vpop.permute.xlu0 %1791
        %1793 = vset.pattern.permute.xlu0 0
        %1794 = vperm.xlu0 %1793, %v1241
        %v1795 = vpop.permute.xlu0 %1794
        %1796 = vset.pattern.permute.xlu0 0
        %1797 = vperm.xlu0 %1796, %v1290
        %v1798 = vpop.permute.xlu0 %1797
        %1799 = vset.pattern.permute.xlu0 0
        %1800 = vperm.xlu0 %1799, %v1339
        %v1801 = vpop.permute.xlu0 %1800
        %1802 = vset.pattern.permute.xlu0 0
        %1803 = vperm.xlu0 %1802, %v1388
        %v1804 = vpop.permute.xlu0 %1803
        %1805 = vset.pattern.permute.xlu0 0
        %1806 = vperm.xlu0 %1805, %v1437
        %v1807 = vpop.permute.xlu0 %1806
        %1808 = vset.pattern.permute.xlu0 0
        %1809 = vperm.xlu0 %1808, %v1486
        %v1810 = vpop.permute.xlu0 %1809
        %1811 = vset.pattern.permute.xlu0 0
        %1812 = vperm.xlu0 %1811, %v1535
        %v1813 = vpop.permute.xlu0 %1812
        %1814 = vset.pattern.permute.xlu0 0
        %1815 = vperm.xlu0 %1814, %v1584
        %v1816 = vpop.permute.xlu0 %1815
        %1817 = vset.pattern.permute.xlu0 0
        %1818 = vperm.xlu0 %1817, %v1633
        %v1819 = vpop.permute.xlu0 %1818
        %1820 = vset.pattern.permute.xlu0 0
        %1821 = vperm.xlu0 %1820, %v1682
        %v1822 = vpop.permute.xlu0 %1821
        %1823 = vset.pattern.permute.xlu0 0
        %1824 = vperm.xlu0 %1823, %v1731
        %v1825 = vpop.permute.xlu0 %1824
        %1826 = vset.pattern.permute.xlu0 0
        %1827 = vperm.xlu0 %1826, %v1780
        %v1828 = vpop.permute.xlu0 %1827
        %v1829 = vlaneseq
        %v1830 = vand.u32 %v1829, 127
        %v1831 = vlaneseq
        %v1832 = vshrl.u32 %v1831, 7
        %v1833 = vsub.s32 %v1830, %v1832
        %v1834 = vrot.slane %v1783, %v1833
        %v1835 = vadd.s32 %v1830, 4294967288
        %v1836 = vlaneseq
        %v1837 = vshrl.u32 %v1836, 7
        %v1838 = vsub.s32 %v1835, %v1837
        %v1839 = vrot.slane %v1786, %v1838
        %vm1840 = vcmask 130112
        %v1841 = vsel %vm1840, %v1839, %v1834
        %v1842 = vadd.s32 %v1830, 4294967280
        %v1843 = vlaneseq
        %v1844 = vshrl.u32 %v1843, 7
        %v1845 = vsub.s32 %v1842, %v1844
        %v1846 = vrot.slane %v1789, %v1845
        %vm1847 = vcmask 195712
        %v1848 = vsel %vm1847, %v1846, %v1841
        %v1849 = vadd.s32 %v1830, 4294967272
        %v1850 = vlaneseq
        %v1851 = vshrl.u32 %v1850, 7
        %v1852 = vsub.s32 %v1849, %v1851
        %v1853 = vrot.slane %v1792, %v1852
        %vm1854 = vcmask 261312
        %v1855 = vsel %vm1854, %v1853, %v1848
        %v1856 = vadd.s32 %v1830, 4294967264
        %v1857 = vlaneseq
        %v1858 = vshrl.u32 %v1857, 7
        %v1859 = vsub.s32 %v1856, %v1858
        %v1860 = vrot.slane %v1795, %v1859
        %vm1861 = vcmask 326912
        %v1862 = vsel %vm1861, %v1860, %v1855
        %v1863 = vadd.s32 %v1830, 4294967256
        %v1864 = vlaneseq
        %v1865 = vshrl.u32 %v1864, 7
        %v1866 = vsub.s32 %v1863, %v1865
        %v1867 = vrot.slane %v1798, %v1866
        %vm1868 = vcmask 392512
        %v1869 = vsel %vm1868, %v1867, %v1862
        %v1870 = vadd.s32 %v1830, 4294967248
        %v1871 = vlaneseq
        %v1872 = vshrl.u32 %v1871, 7
        %v1873 = vsub.s32 %v1870, %v1872
        %v1874 = vrot.slane %v1801, %v1873
        %vm1875 = vcmask 458112
        %v1876 = vsel %vm1875, %v1874, %v1869
        %v1877 = vadd.s32 %v1830, 4294967240
        %v1878 = vlaneseq
        %v1879 = vshrl.u32 %v1878, 7
        %v1880 = vsub.s32 %v1877, %v1879
        %v1881 = vrot.slane %v1804, %v1880
        %vm1882 = vcmask 523712
        %v1883 = vsel %vm1882, %v1881, %v1876
        %v1884 = vadd.s32 %v1830, 4294967232
        %v1885 = vlaneseq
        %v1886 = vshrl.u32 %v1885, 7
        %v1887 = vsub.s32 %v1884, %v1886
        %v1888 = vrot.slane %v1807, %v1887
        %vm1889 = vcmask 589312
        %v1890 = vsel %vm1889, %v1888, %v1883
        %v1891 = vadd.s32 %v1830, 4294967224
        %v1892 = vlaneseq
        %v1893 = vshrl.u32 %v1892, 7
        %v1894 = vsub.s32 %v1891, %v1893
        %v1895 = vrot.slane %v1810, %v1894
        %vm1896 = vcmask 654912
        %v1897 = vsel %vm1896, %v1895, %v1890
        %v1898 = vadd.s32 %v1830, 4294967216
        %v1899 = vlaneseq
        %v1900 = vshrl.u32 %v1899, 7
        %v1901 = vsub.s32 %v1898, %v1900
        %v1902 = vrot.slane %v1813, %v1901
        %vm1903 = vcmask 720512
        %v1904 = vsel %vm1903, %v1902, %v1897
        %v1905 = vadd.s32 %v1830, 4294967208
        %v1906 = vlaneseq
        %v1907 = vshrl.u32 %v1906, 7
        %v1908 = vsub.s32 %v1905, %v1907
        %v1909 = vrot.slane %v1816, %v1908
        %vm1910 = vcmask 786112
        %v1911 = vsel %vm1910, %v1909, %v1904
        %v1912 = vadd.s32 %v1830, 4294967200
        %v1913 = vlaneseq
        %v1914 = vshrl.u32 %v1913, 7
        %v1915 = vsub.s32 %v1912, %v1914
        %v1916 = vrot.slane %v1819, %v1915
        %vm1917 = vcmask 851712
        %v1918 = vsel %vm1917, %v1916, %v1911
        %v1919 = vadd.s32 %v1830, 4294967192
        %v1920 = vlaneseq
        %v1921 = vshrl.u32 %v1920, 7
        %v1922 = vsub.s32 %v1919, %v1921
        %v1923 = vrot.slane %v1822, %v1922
        %vm1924 = vcmask 917312
        %v1925 = vsel %vm1924, %v1923, %v1918
        %v1926 = vadd.s32 %v1830, 4294967184
        %v1927 = vlaneseq
        %v1928 = vshrl.u32 %v1927, 7
        %v1929 = vsub.s32 %v1926, %v1928
        %v1930 = vrot.slane %v1825, %v1929
        %vm1931 = vcmask 982912
        %v1932 = vsel %vm1931, %v1930, %v1925
        %v1933 = vadd.s32 %v1830, 4294967176
        %v1934 = vlaneseq
        %v1935 = vshrl.u32 %v1934, 7
        %v1936 = vsub.s32 %v1933, %v1935
        %v1937 = vrot.slane %v1828, %v1936
        %vm1938 = vcmask 1048512
        %v1939 = vsel %vm1938, %v1937, %v1932
        %v1941 = vunpack.c.l.s4 1966171168
        %v1942 = vunpack.c.0.s8 %v1941
        %v1943 = vlaneseq
        %v1944 = vshrl.u32 %v1943, 7
        %v1945 = vsub.s32 %v1942, %v1944
        %v1946 = vrot.slane %v1939, %v1945
        %v1948 = vunpack.c.l.s4 1966171168
        %v1949 = vunpack.c.0.s8 %v1948
        %v1950 = vlaneseq
        %v1951 = vshrl.u32 %v1950, 7
        %v1952 = vsub.s32 %v1949, %v1951
        %v1953 = vrot.slane %v1946, %v1952
        %v1955 = vadd.f32 %v436, %v1953
        %1956 = vst [vmem:[#allocation5] sm:$0x1] %v1955
        // Predicated region
        $region53: #{tpu_custom_call.1} parent=35 // pred_check
          %p1957 = pneg %p320
        $region54: #{tpu_custom_call.1} parent=35 // pred_check_branch
          %1959 = sbr.rel (%p1957) target = $region56
        $region55: #{tpu_custom_call.1} parent=35 // pred_region
          %v1960 = vld [vmem:[#allocation2] sm:$0xff]
          %v1961 = vld [vmem:[#allocation2 + $0x8] sm:$0xff]
          %v1962 = vld [vmem:[#allocation3] sm:$0xff]
          %1964 = vset.pattern.permute.xlu0 0
          %1965 = vperm.xlu0 %1964, %v1962
          %v1966 = vpop.permute.xlu0 %1965
          %v1968 = vadd.f32 %v1960, %v1966
          %v1969 = vmul.f32 %v1968, 0.0078125
          %v1970 = vld [vmem:[#allocation4] sm:$0xff]
          %v1971 = vld [vmem:[#allocation5] sm:$0x1]
          %1973 = vset.pattern.permute.xlu0 0
          %1974 = vperm.xlu0 %1973, %v1970
          %v1975 = vpop.permute.xlu0 %1974
          %v1978 = vlaneseq
          %v1979 = vshrl.u32 %v1978, 7
          %v1980 = vsub.s32 0, %v1979
          %v1981 = vrot.slane %v1971, %v1980
          %v1983 = vadd.f32 %v1975, %v1981
          %v1984 = vadd.f32 %v1983, 1.0
          %v1985 = vmul.f32 %v1961, 2.0
          %v1986 = vadd.f32 %v1985, 1.0
          %v1987 = vrcp.pop %v1984
          %v1988 = vmul.f32 %v1986, %v1987
          %v1989 = vsub.f32 1.0, %v1988
          %v1990 = vmul.f32 %v1969, 5.0
          %v1991 = vld [vmem:[%s278] sm:$0xff]
          %v1992 = vmul.f32 %v1991, 2.0
          %v1993 = vadd.f32 %v1990, %v1992
          %v1994 = vmul.f32 %v1989, 5.0
          %v1995 = vadd.f32 %v1993, %v1994
          %v1996 = vld [vmem:[%s318] sm:$0x1]
          %vm1997 = vcmp.gt.f32.partialorder %v1996, 0.5
          %v1998 = vsel %vm1997, 1, 0
          %v1999 = vlaneseq
          %v2000 = vshrl.u32 %v1999, 7
          %v2001 = vsub.s32 0, %v2000
          %v2002 = vrot.slane %v1998, %v2001
          %vm2003 = vcmp.eq.s32.totalorder %v2002, 1
          %v2004 = vsel %vm2003, %v1995, 1000000.0
          %2005 = vst [vmem:[%s315] sm:$0xff] %v2004
        $region56: #{tpu_custom_call.1} parent=35 // pred_fallthru
          _
        %s2006 = sand.u32 %s152, 1
        %s2007 = scalar_lea.sflag [#allocation8], %s2006
        %s2008 = sand.u32 %s152, 1
        %s2009 = smul.addr %s2008, 8
        %s2010 = scalar_lea.vmem [#allocation12], %s2009
        // Predicated region
        $region57: #{tpu_custom_call.1} parent=35 // pred_check
          %p2011 = pneg %p162
        $region58: #{tpu_custom_call.1} parent=35 // pred_check_branch
          %2013 = sbr.rel (%p2011) target = $region60
        $region59: #{tpu_custom_call.1} parent=35 // pred_region
          %s2015 = ssub.s32 128, 128
          %2016 = vsyncadd %s2007, %s2015
          %s2017 = smul.addr %s28, 128
          %s2018 = scalar_lea.hbm %s4, %s2017
          %s2020 = sshll.u32 %s2010, 4
          %s2021 = int_to_ptr.vmem [resolvable:$true] %s2020
          %2023 = dma.vmem_to_hbm [thread:$0]  %s2021, 128, %s2018, %s2007
        $region60: #{tpu_custom_call.1} parent=35 // pred_fallthru
          _
      $region36: #{tpu_custom_call.1} parent=5 // pred_fallthru
        _
      %p2024 = scmp.le.s32.totalorder 2, %s19
      // Predicated region
      $region61: #{tpu_custom_call.1} parent=5 // pred_check
        %p2025 = pneg %p2024
      $region62: #{tpu_custom_call.1} parent=5 // pred_check_branch
        %2027 = sbr.rel (%p2025) target = $region64
      $region63: #{tpu_custom_call.1} parent=5 // pred_region
        %s2028 = ssub.s32 %s19, 2
        // Predicated region
        $region65: #{tpu_custom_call.1} parent=63 // pred_check
          %p2029 = pneg %p168
        $region66: #{tpu_custom_call.1} parent=63 // pred_check_branch
          %2031 = sbr.rel (%p2029) target = $region68
        $region67: #{tpu_custom_call.1} parent=63 // pred_region
          %s2032 = sand.u32 %s153, 1
          %s2033 = scalar_lea.sflag [#allocation8], %s2032
          %s2034 = sand.u32 %s153, 1
          %s2035 = smul.addr %s2034, 8
          %s2036 = scalar_lea.vmem [#allocation12], %s2035
          %2037 = dma.done %s2033, 128
        $region68: #{tpu_custom_call.1} parent=63 // pred_fallthru
          _
      $region64: #{tpu_custom_call.1} parent=5 // pred_fallthru
        _
    $region6: #{tpu_custom_call.1} parent=1 // loop_footer
      %s23 = sadd.s32 1, %s19
    $region7: #{tpu_custom_call.1} parent=1 // loop_footer_branch
      %18 = sbr.rel target = $region3
    $region8: #{tpu_custom_call.1} parent=1 // loop_exit
      _
    %2038 = vsyncpa [#allocation7], 1
    %s2039 = scalar_lea.sflag [#allocation7], 1
    %2040 = vsyncpa %s2039, 1
    %2041 = vsyncpa [#allocation10], 1
    %s2042 = scalar_lea.sflag [#allocation10], 1
    %2043 = vsyncpa %s2042, 1
    %2044 = vsyncpa [#allocation8], 1
    %s2045 = scalar_lea.sflag [#allocation8], 1
    %2046 = vsyncpa %s2045, 1

</llo_original>
